<compile_context>
chip_gen: v7x
topology: tpu7x:2x2x1
jax: 0.10.0
libtpu: 0.0.40
codegen_flags: <defaults>
</compile_context>

<pallas_src>
import functools

import jax
import jax.numpy as jnp
from jax.experimental import pallas as pl
from jax.experimental.pallas import tpu as pltpu

BN_EPS = 1e-5
_VMEM_LIMIT = 32 * 1024 * 1024  # safe on v5e/v6e/v7x scoped-VMEM budgets


def _round_up(x, m):
    return ((x + m - 1) // m) * m


# ----------------------------------------------------------------------------
# Pallas kernels
# ----------------------------------------------------------------------------
def _pw_kernel(x_ref, w_ref, b_ref, o_ref, *, relu):
    # x_ref: (tm, Cin) bf16, w_ref: (Cin, Cout) bf16, b_ref: (1, Cout) f32
    acc = jnp.dot(x_ref[...], w_ref[...], preferred_element_type=jnp.float32)
    acc = acc + b_ref[...]
    if relu:
        acc = jnp.maximum(acc, 0.0)
    o_ref[...] = acc.astype(o_ref.dtype)


def _pw_add_kernel(x_ref, w_ref, b_ref, r_ref, o_ref):
    # 1x1 conv + BN fused with the residual add (out = conv3(x) + shortcut).
    acc = jnp.dot(x_ref[...], w_ref[...], preferred_element_type=jnp.float32)
    acc = acc + b_ref[...] + r_ref[...].astype(jnp.float32)
    o_ref[...] = acc.astype(o_ref.dtype)


def _pw_dual_kernel(x_ref, w1_ref, b1_ref, wsc_ref, bsc_ref, o1_ref, osc_ref):
    # conv1(+ReLU) and shortcut conv share the same x tile: one HBM read of x,
    # two MXU matmuls, two outputs.
    x = x_ref[...]
    a1 = jnp.dot(x, w1_ref[...], preferred_element_type=jnp.float32) + b1_ref[...]
    o1_ref[...] = jnp.maximum(a1, 0.0).astype(o1_ref.dtype)
    a2 = jnp.dot(x, wsc_ref[...], preferred_element_type=jnp.float32) + bsc_ref[...]
    osc_ref[...] = a2.astype(osc_ref.dtype)


def _make_dw_kernel(stride, Ho, Wo):
    s = stride

    def dw_kernel(x_ref, w_ref, b_ref, o_ref):
        # x_ref: (s*s, Hh, Wh, tc) parity-decomposed padded input (bf16)
        # w_ref: (3, 3, tc) f32, b_ref: (1, tc) f32, o_ref: (1, Ho, Wo, tc)
        xv = x_ref[...].astype(jnp.float32)      # VPU math in f32 (v5e-safe)
        w = w_ref[...].astype(jnp.float32)       # loaded once (broadcasts hoisted)
        b = b_ref[...].astype(jnp.float32)
        tc = xv.shape[-1]

        acc = jnp.zeros((Ho, Wo, tc), jnp.float32)
        for kh in range(3):
            for kw in range(3):
                plane = (kh % s) * s + (kw % s)
                r0, c0 = kh // s, kw // s
                tap = xv[plane, r0:r0 + Ho, c0:c0 + Wo, :]   # contiguous slices only
                acc = acc + tap * w[kh, kw, :]
        acc = acc + b.reshape(1, 1, tc)
        o_ref[...] = jnp.maximum(acc, 0.0)[None].astype(o_ref.dtype)

    return dw_kernel


# ----------------------------------------------------------------------------
# pallas_call wrappers
# ----------------------------------------------------------------------------
def pointwise_conv_bn(x_flat, w, b, *, relu, residual=None,
                      out_dtype=jnp.bfloat16, tm=512):
    """Fused 1x1 conv + BN (+ optional ReLU / residual add)."""
    M, Cin = x_flat.shape
    Cout = w.shape[1]
    tm = min(tm, _round_up(M, 8))
    Mp = _round_up(M, tm)
    if Mp != M:
        x_flat = jnp.pad(x_flat, ((0, Mp - M), (0, 0)))
        if residual is not None:
            residual = jnp.pad(residual, ((0, Mp - M), (0, 0)))
    grid = (Mp // tm,)

    x_flat = x_flat.astype(jnp.bfloat16)
    w = w.astype(jnp.bfloat16)
    b2 = b.reshape(1, Cout).astype(jnp.float32)

    in_specs = [
        pl.BlockSpec((tm, Cin), lambda i: (i, 0)),
        pl.BlockSpec((Cin, Cout), lambda i: (0, 0)),
        pl.BlockSpec((1, Cout), lambda i: (0, 0)),
    ]
    args = [x_flat, w, b2]
    if residual is None:
        kernel = functools.partial(_pw_kernel, relu=relu)
    else:
        kernel = _pw_add_kernel
        in_specs.append(pl.BlockSpec((tm, Cout), lambda i: (i, 0)))
        args.append(residual.astype(jnp.bfloat16))

    out = pl.pallas_call(
        kernel,
        out_shape=jax.ShapeDtypeStruct((Mp, Cout), out_dtype),
        grid=grid,
        in_specs=in_specs,
        out_specs=pl.BlockSpec((tm, Cout), lambda i: (i, 0)),
        compiler_params=pltpu.CompilerParams(
            dimension_semantics=("parallel",),
            vmem_limit_bytes=_VMEM_LIMIT),
    )(*args)
    return out[:M] if Mp != M else out


def pointwise_conv_bn_dual(x_flat, w1, b1, wsc, bsc, *,
                           out_dtype=jnp.bfloat16, tm=512):
    """conv1(+ReLU) and shortcut 1x1 conv fused in a single pallas_call."""
    M, Cin = x_flat.shape
    C1, C2 = w1.shape[1], wsc.shape[1]
    tm = min(tm, _round_up(M, 8))
    Mp = _round_up(M, tm)
    if Mp != M:
        x_flat = jnp.pad(x_flat, ((0, Mp - M), (0, 0)))
    grid = (Mp // tm,)
    x_flat = x_flat.astype(jnp.bfloat16)

    out1, out_sc = pl.pallas_call(
        _pw_dual_kernel,
        out_shape=(jax.ShapeDtypeStruct((Mp, C1), out_dtype),
                   jax.ShapeDtypeStruct((Mp, C2), out_dtype)),
        grid=grid,
        in_specs=[
            pl.BlockSpec((tm, Cin), lambda i: (i, 0)),
            pl.BlockSpec((Cin, C1), lambda i: (0, 0)),
            pl.BlockSpec((1, C1), lambda i: (0, 0)),
            pl.BlockSpec((Cin, C2), lambda i: (0, 0)),
            pl.BlockSpec((1, C2), lambda i: (0, 0)),
        ],
        out_specs=(pl.BlockSpec((tm, C1), lambda i: (i, 0)),
                   pl.BlockSpec((tm, C2), lambda i: (i, 0))),
        compiler_params=pltpu.CompilerParams(
            dimension_semantics=("parallel",),
            vmem_limit_bytes=_VMEM_LIMIT),
    )(x_flat, w1.astype(jnp.bfloat16), b1.reshape(1, C1).astype(jnp.float32),
      wsc.astype(jnp.bfloat16), bsc.reshape(1, C2).astype(jnp.float32))
    if Mp != M:
        out1, out_sc = out1[:M], out_sc[:M]
    return out1, out_sc


def depthwise_conv_bn_relu(x_nhwc, w33c, b, stride, *, out_dtype=jnp.bfloat16):
    """Fused 3x3 depthwise conv (padding=1, stride in {1,2}) + BN + ReLU."""
    N, H, W, C = x_nhwc.shape
    assert stride in (1, 2), "MobileNet depthwise strides are 1 or 2"
    assert H % stride == 0 and W % stride == 0
    Ho, Wo = H // stride, W // stride
    s = stride
    s2 = s * s

    xp = jnp.pad(x_nhwc, ((0, 0), (1, 1), (1, 1), (0, 0)))
    if s == 1:
        xr = xp                                            # (N, H+2, W+2, C)
    else:
        # Parity decomposition at the XLA boundary: (N, 2, 2, Ho+1, Wo+1, C)
        # so the kernel only touches the taps it actually needs.
        xr = xp.reshape(N, Ho + 1, 2, Wo + 1, 2, C)
        xr = xr.transpose(0, 2, 4, 1, 3, 5).reshape(N * s2, Ho + 1, Wo + 1, C)
    Hh, Wh = xr.shape[1], xr.shape[2]

    tc = 128 if C % 128 == 0 else C
    grid = (N, C // tc)

    return pl.pallas_call(
        _make_dw_kernel(s, Ho, Wo),
        out_shape=jax.ShapeDtypeStruct((N, Ho, Wo, C), out_dtype),
        grid=grid,
        in_specs=[
            pl.BlockSpec((s2, Hh, Wh, tc), lambda n, c: (n, 0, 0, c)),
            pl.BlockSpec((3, 3, tc), lambda n, c: (0, 0, c)),
            pl.BlockSpec((1, tc), lambda n, c: (0, c)),
        ],
        out_specs=pl.BlockSpec((1, Ho, Wo, tc), lambda n, c: (n, 0, 0, c)),
        compiler_params=pltpu.CompilerParams(
            dimension_semantics=("parallel", "parallel"),
            vmem_limit_bytes=_VMEM_LIMIT),
    )(xr, w33c.astype(jnp.float32), b.reshape(1, C).astype(jnp.float32))


# ----------------------------------------------------------------------------
# Parameter construction (deterministic, BN folded into conv)
# ----------------------------------------------------------------------------
def _fuse_bn(gamma, beta, mean, var):
    scale = gamma / jnp.sqrt(var + BN_EPS)
    bias = beta - mean * scale
    return scale, bias


def _init_convbn(key, cin, cout, pointwise=True):
    kw_, kg, kb, km, kv = jax.random.split(key, 5)
    if pointwise:
        w = jax.random.normal(kw_, (cout, cin, 1, 1), jnp.float32) * 0.1
    else:  # depthwise: cin == cout == groups
        w = jax.random.normal(kw_, (cout, 1, 3, 3), jnp.float32) * 0.1
    gamma = jax.random.uniform(kg, (cout,), jnp.float32, 0.5, 1.5)
    beta = jax.random.normal(kb, (cout,), jnp.float32) * 0.05
    mean = jax.random.normal(km, (cout,), jnp.float32) * 0.05
    var = jax.random.uniform(kv, (cout,), jnp.float32, 0.5, 1.5)
    scale, bias = _fuse_bn(gamma, beta, mean, var)
    if pointwise:
        w_eff = jnp.transpose(w[:, :, 0, 0], (1, 0)) * scale[None, :]      # (cin, cout)
    else:
        w_eff = jnp.transpose(w[:, 0, :, :], (1, 2, 0)) * scale[None, None, :]  # (3,3,c)
    return w_eff, bias


def init_qbw_block_params(key, in_planes, out_planes, expansion, stride):
    planes = expansion * in_planes
    k1, k2, k3, k4 = jax.random.split(key, 4)
    params = {}
    params["w1"], params["b1"] = _init_convbn(k1, in_planes, planes, pointwise=True)
    params["w2"], params["b2"] = _init_convbn(k2, planes, planes, pointwise=False)
    params["w3"], params["b3"] = _init_convbn(k3, planes, out_planes, pointwise=True)
    if stride == 1 and in_planes != out_planes:
        params["wsc"], params["bsc"] = _init_convbn(k4, in_planes, out_planes,
                                                    pointwise=True)
    else:
        params["wsc"], params["bsc"] = None, None
    return params


# ----------------------------------------------------------------------------
# QBWBlock forward
# ----------------------------------------------------------------------------
def qbw_block_forward(x_nchw, params, stride):
    x = jnp.transpose(x_nchw, (0, 2, 3, 1)).astype(jnp.float32)  # NCHW -> NHWC
    N, H, W, Cin = x.shape
    planes = params["w1"].shape[1]
    out_planes = params["w3"].shape[1]
    x_flat = x.reshape(N * H * W, Cin)

    sc_flat = None
    if stride == 1:
        if params["wsc"] is not None:
            # conv1 + shortcut conv fused (x read from HBM only once).
            out1_flat, sc_flat = pointwise_conv_bn_dual(
                x_flat, params["w1"], params["b1"], params["wsc"], params["bsc"])
        else:
            out1_flat = pointwise_conv_bn(x_flat, params["w1"], params["b1"],
                                          relu=True)
            sc_flat = x_flat.astype(jnp.bfloat16)   # identity shortcut
    else:
        out1_flat = pointwise_conv_bn(x_flat, params["w1"], params["b1"], relu=True)

    out1 = out1_flat.reshape(N, H, W, planes)

    # conv2: 3x3 depthwise (padding=1, stride) + bn2 + relu
    out2 = depthwise_conv_bn_relu(out1, params["w2"], params["b2"], stride)
    _, Ho, Wo, _ = out2.shape
    out2_flat = out2.reshape(N * Ho * Wo, planes)

    # conv3 (1x1) + bn3 (+ residual when stride == 1), f32 output
    out3_flat = pointwise_conv_bn(out2_flat, params["w3"], params["b3"],
                                  relu=False, residual=sc_flat,
                                  out_dtype=jnp.float32)
    out = out3_flat.reshape(N, Ho, Wo, out_planes)
    return jnp.transpose(out, (0, 3, 1, 2))  # back to NCHW


# ----------------------------------------------------------------------------
# Pure-JAX f32 reference (same folded conv+BN semantics)
# ----------------------------------------------------------------------------
def _reference_forward(x_nchw, params, stride):
    x = jnp.transpose(x_nchw, (0, 2, 3, 1)).astype(jnp.float32)
    N, H, W, _ = x.shape
    h = jnp.maximum(jnp.einsum("nhwc,cd->nhwd", x, params["w1"]) + params["b1"], 0.0)
    hp = jnp.pad(h, ((0, 0), (1, 1), (1, 1), (0, 0)))
    C = h.shape[-1]
    Ho, Wo = H // stride, W // stride
    acc = jnp.zeros((N, Ho, Wo, C), jnp.float32)
    for kh in range(3):
        for kw in range(3):
            tap = hp[:, kh:kh + Ho * stride:stride, kw:kw + Wo * stride:stride, :]
            acc = acc + tap * params["w2"][kh, kw, :]
    h2 = jnp.maximum(acc + params["b2"], 0.0)
    out = jnp.einsum("nhwc,cd->nhwd", h2, params["w3"]) + params["b3"]
    if stride == 1:
        if params["wsc"] is not None:
            sc = jnp.einsum("nhwc,cd->nhwd", x, params["wsc"]) + params["bsc"]
        else:
            sc = x
        out = out + sc
    return jnp.transpose(out, (0, 3, 1, 2))


# ----------------------------------------------------------------------------
if __name__ == "__main__":
    key = jax.random.PRNGKey(0)
    configs = [
        # (in_planes, out_planes, expansion, stride)
        (4, 8, 2, 1),   # 1x1 shortcut conv path
        (8, 8, 2, 1),   # identity shortcut path
        (4, 8, 2, 2),   # strided path, no shortcut
    ]
    N, Hs, Ws = 2, 16, 16

    for idx, (cin, cout, exp, stride) in enumerate(configs):
        kx, kp, key = jax.random.split(key, 3)
        x = jax.random.normal(kx, (N, cin, Hs, Ws), jnp.float32)  # NCHW input
        params = init_qbw_block_params(kp, cin, cout, exp, stride)

        y = jax.block_until_ready(qbw_block_forward(x, params, stride))
        assert y.shape == (N, cout, Hs // stride, Ws // stride)

        y_ref = _reference_forward(x, params, stride)
        err = float(jnp.max(jnp.abs(y - y_ref)))
        assert err < 5e-2, f"config {idx}: max abs err {err}"

    print("KERNEL_OK")
</pallas_src>

<mosaic_0001>
module attributes {stable_mosaic.version = 11 : i64} {
  func.func @_pw_dual_kernel(%arg0: i32, %arg1: memref<512x4xbf16, #tpu.memory_space<vmem>>, %arg2: memref<4x8xbf16, #tpu.memory_space<vmem>>, %arg3: memref<1x8xf32, #tpu.memory_space<vmem>>, %arg4: memref<4x8xbf16, #tpu.memory_space<vmem>>, %arg5: memref<1x8xf32, #tpu.memory_space<vmem>>, %arg6: memref<512x8xbf16, #tpu.memory_space<vmem>>, %arg7: memref<512x8xbf16, #tpu.memory_space<vmem>>) attributes {dimension_semantics = [#tpu.dimension_semantics<parallel>], iteration_bounds = array<i64: 1>, scalar_prefetch = 0 : i64, scratch_operands = 0 : i64, tpu.core_type = #tpu.core_type<tc>, window_params = [{transform_indices = @transform_0, window_bounds = array<i64: 512, 4>}, {pipeline_mode = #tpu.pipeline_mode<synchronous>, transform_indices = @transform_1, window_bounds = array<i64: 4, 8>}, {pipeline_mode = #tpu.pipeline_mode<synchronous>, transform_indices = @transform_2, window_bounds = array<i64: 1, 8>}, {pipeline_mode = #tpu.pipeline_mode<synchronous>, transform_indices = @transform_3, window_bounds = array<i64: 4, 8>}, {pipeline_mode = #tpu.pipeline_mode<synchronous>, transform_indices = @transform_4, window_bounds = array<i64: 1, 8>}, {transform_indices = @transform_5, window_bounds = array<i64: 512, 8>}, {transform_indices = @transform_6, window_bounds = array<i64: 512, 8>}]} {
    %c0 = arith.constant 0 : index
    %c0_0 = arith.constant 0 : index
    %0 = vector.load %arg1[%c0, %c0_0] : memref<512x4xbf16, #tpu.memory_space<vmem>>, vector<512x4xbf16>
    %c0_1 = arith.constant 0 : index
    %c0_2 = arith.constant 0 : index
    %1 = vector.load %arg2[%c0_1, %c0_2] : memref<4x8xbf16, #tpu.memory_space<vmem>>, vector<4x8xbf16>
    %cst = arith.constant dense<0.000000e+00> : vector<512x8xf32>
    %2 = tpu.matmul %0, %1, %cst {dimension_numbers = #tpu.dot_dimension_numbers<[1], [0], [0], [1], [0, 0, 1, 1], [], []>} : vector<512x4xbf16>, vector<4x8xbf16>, vector<512x8xf32> -> vector<512x8xf32>
    %c0_3 = arith.constant 0 : index
    %c0_4 = arith.constant 0 : index
    %3 = vector.load %arg3[%c0_3, %c0_4] : memref<1x8xf32, #tpu.memory_space<vmem>>, vector<1x8xf32>
    %4 = vector.broadcast %3 : vector<1x8xf32> to vector<512x8xf32>
    %5 = arith.addf %2, %4 : vector<512x8xf32>
    %cst_5 = arith.constant 0.000000e+00 : f32
    %6 = vector.broadcast %cst_5 : f32 to vector<512x8xf32>
    %7 = arith.maximumf %5, %6 : vector<512x8xf32>
    %8 = arith.truncf %7 : vector<512x8xf32> to vector<512x8xbf16>
    %c0_6 = arith.constant 0 : index
    %c0_7 = arith.constant 0 : index
    %9 = vector.load %arg6[%c0_6, %c0_7] : memref<512x8xbf16, #tpu.memory_space<vmem>>, vector<512x8xbf16>
    tpu.vector_store %arg6[%c0_6, %c0_7], %8 {strides = array<i32>} : memref<512x8xbf16, #tpu.memory_space<vmem>>, vector<512x8xbf16>,
    %c0_8 = arith.constant 0 : index
    %c0_9 = arith.constant 0 : index
    %10 = vector.load %arg4[%c0_8, %c0_9] : memref<4x8xbf16, #tpu.memory_space<vmem>>, vector<4x8xbf16>
    %cst_10 = arith.constant dense<0.000000e+00> : vector<512x8xf32>
    %11 = tpu.matmul %0, %10, %cst_10 {dimension_numbers = #tpu.dot_dimension_numbers<[1], [0], [0], [1], [0, 0, 1, 1], [], []>} : vector<512x4xbf16>, vector<4x8xbf16>, vector<512x8xf32> -> vector<512x8xf32>
    %c0_11 = arith.constant 0 : index
    %c0_12 = arith.constant 0 : index
    %12 = vector.load %arg5[%c0_11, %c0_12] : memref<1x8xf32, #tpu.memory_space<vmem>>, vector<1x8xf32>
    %13 = vector.broadcast %12 : vector<1x8xf32> to vector<512x8xf32>
    %14 = arith.addf %11, %13 : vector<512x8xf32>
    %15 = arith.truncf %14 : vector<512x8xf32> to vector<512x8xbf16>
    %c0_13 = arith.constant 0 : index
    %c0_14 = arith.constant 0 : index
    %16 = vector.load %arg7[%c0_13, %c0_14] : memref<512x8xbf16, #tpu.memory_space<vmem>>, vector<512x8xbf16>
    tpu.vector_store %arg7[%c0_13, %c0_14], %15 {strides = array<i32>} : memref<512x8xbf16, #tpu.memory_space<vmem>>, vector<512x8xbf16>,
    return
  }
  func.func @transform_0(%arg0: i32) -> (i32, i32) {
    %c0_i32 = arith.constant 0 : i32
    %c0_i32_0 = arith.constant 0 : i32
    return %arg0, %c0_i32 : i32, i32
  }
  func.func @transform_1(%arg0: i32) -> (i32, i32) {
    %c0_i32 = arith.constant 0 : i32
    %c0_i32_0 = arith.constant 0 : i32
    %c0_i32_1 = arith.constant 0 : i32
    return %c0_i32, %c0_i32_0 : i32, i32
  }
  func.func @transform_2(%arg0: i32) -> (i32, i32) {
    %c0_i32 = arith.constant 0 : i32
    %c0_i32_0 = arith.constant 0 : i32
    %c0_i32_1 = arith.constant 0 : i32
    return %c0_i32, %c0_i32_0 : i32, i32
  }
  func.func @transform_3(%arg0: i32) -> (i32, i32) {
    %c0_i32 = arith.constant 0 : i32
    %c0_i32_0 = arith.constant 0 : i32
    %c0_i32_1 = arith.constant 0 : i32
    return %c0_i32, %c0_i32_0 : i32, i32
  }
  func.func @transform_4(%arg0: i32) -> (i32, i32) {
    %c0_i32 = arith.constant 0 : i32
    %c0_i32_0 = arith.constant 0 : i32
    %c0_i32_1 = arith.constant 0 : i32
    return %c0_i32, %c0_i32_0 : i32, i32
  }
  func.func @transform_5(%arg0: i32) -> (i32, i32) {
    %c0_i32 = arith.constant 0 : i32
    %c0_i32_0 = arith.constant 0 : i32
    return %arg0, %c0_i32 : i32, i32
  }
  func.func @transform_6(%arg0: i32) -> (i32, i32) {
    %c0_i32 = arith.constant 0 : i32
    %c0_i32_0 = arith.constant 0 : i32
    return %arg0, %c0_i32 : i32, i32
  }
}

</mosaic_0001>

<llo_original>
// kernel: tpu_custom_call.1
$region0: #{tpu_custom_call.1}
  #allocation0 [shape = 'u32[]', space=smem, size = 0x4, offset = 0x4, fixed_abs, tag = 'smem constant byte address 0x4 - core index']
  #allocation1 [shape = 'u32[144,128]{1,0:T(1,128)}', space=vmem, size = 0x12000, scoped, tag = 'internal scratch']
  %s0 = inlined_call_operand.vmem [shape: bf16[512,4], index: 0, kind: input, shape index: {}]
  %s1 = inlined_call_operand.vmem [shape: bf16[4,8], index: 1, kind: input, shape index: {}]
  %s2 = inlined_call_operand.vmem [shape: f32[1,8], index: 2, kind: input, shape index: {}]
  %s3 = inlined_call_operand.vmem [shape: bf16[4,8], index: 3, kind: input, shape index: {}]
  %s4 = inlined_call_operand.vmem [shape: f32[1,8], index: 4, kind: input, shape index: {}]
  %s5 = inlined_call_operand.vmem [shape: bf16[512,8], index: 5, kind: output, shape index: {0}]
  %s6 = inlined_call_operand.vmem [shape: bf16[512,8], index: 6, kind: output, shape index: {1}]
  %7 = xla_tuple %s5, %s6
  %s8 = sld [smem:[#allocation0]]
  $region38: #{tpu_custom_call.1} parent=0
    _
  %s10 = ssub.s32 1, %s8
  %s11 = scalar_select 0, %s10, %s8
  // Predicated region
  $region2: #{tpu_custom_call.1} parent=0 // pred_check
    _
  $region3: #{tpu_custom_call.1} parent=0 // pred_check_branch
    %13 = sbr.rel (0) target = $region5
  $region4: #{tpu_custom_call.1} parent=0 // pred_region
    _
  $region5: #{tpu_custom_call.1} parent=0 // pred_fallthru
    _
  // Predicated region
  $region6: #{tpu_custom_call.1} parent=0 // pred_check
    _
  $region7: #{tpu_custom_call.1} parent=0 // pred_check_branch
    %15 = sbr.rel (0) target = $region9
  $region8: #{tpu_custom_call.1} parent=0 // pred_region
    _
  $region9: #{tpu_custom_call.1} parent=0 // pred_fallthru
    _
  // Predicated region
  $region10: #{tpu_custom_call.1} parent=0 // pred_check
    _
  $region11: #{tpu_custom_call.1} parent=0 // pred_check_branch
    %17 = sbr.rel (0) target = $region13
  $region12: #{tpu_custom_call.1} parent=0 // pred_region
    _
  $region13: #{tpu_custom_call.1} parent=0 // pred_fallthru
    _
  // Predicated region
  $region14: #{tpu_custom_call.1} parent=0 // pred_check
    _
  $region15: #{tpu_custom_call.1} parent=0 // pred_check_branch
    %19 = sbr.rel (0) target = $region17
  $region16: #{tpu_custom_call.1} parent=0 // pred_region
    _
  $region17: #{tpu_custom_call.1} parent=0 // pred_fallthru
    _
  // Predicated region
  $region18: #{tpu_custom_call.1} parent=0 // pred_check
    _
  $region19: #{tpu_custom_call.1} parent=0 // pred_check_branch
    %21 = sbr.rel (0) target = $region21
  $region20: #{tpu_custom_call.1} parent=0 // pred_region
    _
  $region21: #{tpu_custom_call.1} parent=0 // pred_fallthru
    _
  %v23 = vld [vmem:[%s0] sm:$0xf]
  %v24 = vld [vmem:[%s0 + $0x4] sm:$0xf]
  %v25 = vld [vmem:[%s0 + $0x8] sm:$0xf]
  %v26 = vld [vmem:[%s0 + $0xc] sm:$0xf]
  %v27 = vld [vmem:[%s0 + $0x10] sm:$0xf]
  %v28 = vld [vmem:[%s0 + $0x14] sm:$0xf]
  %v29 = vld [vmem:[%s0 + $0x18] sm:$0xf]
  %v30 = vld [vmem:[%s0 + $0x1c] sm:$0xf]
  %v31 = vld [vmem:[%s0 + $0x20] sm:$0xf]
  %v32 = vld [vmem:[%s0 + $0x24] sm:$0xf]
  %v33 = vld [vmem:[%s0 + $0x28] sm:$0xf]
  %v34 = vld [vmem:[%s0 + $0x2c] sm:$0xf]
  %v35 = vld [vmem:[%s0 + $0x30] sm:$0xf]
  %v36 = vld [vmem:[%s0 + $0x34] sm:$0xf]
  %v37 = vld [vmem:[%s0 + $0x38] sm:$0xf]
  %v38 = vld [vmem:[%s0 + $0x3c] sm:$0xf]
  %v39 = vld [vmem:[%s0 + $0x40] sm:$0xf]
  %v40 = vld [vmem:[%s0 + $0x44] sm:$0xf]
  %v41 = vld [vmem:[%s0 + $0x48] sm:$0xf]
  %v42 = vld [vmem:[%s0 + $0x4c] sm:$0xf]
  %v43 = vld [vmem:[%s0 + $0x50] sm:$0xf]
  %v44 = vld [vmem:[%s0 + $0x54] sm:$0xf]
  %v45 = vld [vmem:[%s0 + $0x58] sm:$0xf]
  %v46 = vld [vmem:[%s0 + $0x5c] sm:$0xf]
  %v47 = vld [vmem:[%s0 + $0x60] sm:$0xf]
  %v48 = vld [vmem:[%s0 + $0x64] sm:$0xf]
  %v49 = vld [vmem:[%s0 + $0x68] sm:$0xf]
  %v50 = vld [vmem:[%s0 + $0x6c] sm:$0xf]
  %v51 = vld [vmem:[%s0 + $0x70] sm:$0xf]
  %v52 = vld [vmem:[%s0 + $0x74] sm:$0xf]
  %v53 = vld [vmem:[%s0 + $0x78] sm:$0xf]
  %v54 = vld [vmem:[%s0 + $0x7c] sm:$0xf]
  %v55 = vld [vmem:[%s0 + $0x80] sm:$0xf]
  %v56 = vld [vmem:[%s0 + $0x84] sm:$0xf]
  %v57 = vld [vmem:[%s0 + $0x88] sm:$0xf]
  %v58 = vld [vmem:[%s0 + $0x8c] sm:$0xf]
  %v59 = vld [vmem:[%s0 + $0x90] sm:$0xf]
  %v60 = vld [vmem:[%s0 + $0x94] sm:$0xf]
  %v61 = vld [vmem:[%s0 + $0x98] sm:$0xf]
  %v62 = vld [vmem:[%s0 + $0x9c] sm:$0xf]
  %v63 = vld [vmem:[%s0 + $0xa0] sm:$0xf]
  %v64 = vld [vmem:[%s0 + $0xa4] sm:$0xf]
  %v65 = vld [vmem:[%s0 + $0xa8] sm:$0xf]
  %v66 = vld [vmem:[%s0 + $0xac] sm:$0xf]
  %v67 = vld [vmem:[%s0 + $0xb0] sm:$0xf]
  %v68 = vld [vmem:[%s0 + $0xb4] sm:$0xf]
  %v69 = vld [vmem:[%s0 + $0xb8] sm:$0xf]
  %v70 = vld [vmem:[%s0 + $0xbc] sm:$0xf]
  %v71 = vld [vmem:[%s0 + $0xc0] sm:$0xf]
  %v72 = vld [vmem:[%s0 + $0xc4] sm:$0xf]
  %v73 = vld [vmem:[%s0 + $0xc8] sm:$0xf]
  %v74 = vld [vmem:[%s0 + $0xcc] sm:$0xf]
  %v75 = vld [vmem:[%s0 + $0xd0] sm:$0xf]
  %v76 = vld [vmem:[%s0 + $0xd4] sm:$0xf]
  %v77 = vld [vmem:[%s0 + $0xd8] sm:$0xf]
  %v78 = vld [vmem:[%s0 + $0xdc] sm:$0xf]
  %v79 = vld [vmem:[%s0 + $0xe0] sm:$0xf]
  %v80 = vld [vmem:[%s0 + $0xe4] sm:$0xf]
  %v81 = vld [vmem:[%s0 + $0xe8] sm:$0xf]
  %v82 = vld [vmem:[%s0 + $0xec] sm:$0xf]
  %v83 = vld [vmem:[%s0 + $0xf0] sm:$0xf]
  %v84 = vld [vmem:[%s0 + $0xf4] sm:$0xf]
  %v85 = vld [vmem:[%s0 + $0xf8] sm:$0xf]
  %v86 = vld [vmem:[%s0 + $0xfc] sm:$0xf]
  %v87 = vld [vmem:[%s1] sm:$0x3]
  %v88 = vld [vmem:[%s2] sm:$0x1]
  %v90 = vlaneseq
  %v91 = vshrl.u32 %v90, 7
  %v92 = vsub.s32 0, %v91
  %v93 = vrot.slane %v88, %v92
  %v159 = vunpack.c.l.b16 %v23
  %v160 = vunpack.c.l.b16 %v24
  %v161 = vunpack.c.l.b16 %v25
  %v162 = vunpack.c.l.b16 %v26
  %v163 = vunpack.c.l.b16 %v27
  %v164 = vunpack.c.l.b16 %v28
  %v165 = vunpack.c.l.b16 %v29
  %v166 = vunpack.c.l.b16 %v30
  %v167 = vunpack.c.l.b16 %v31
  %v168 = vunpack.c.l.b16 %v32
  %v169 = vunpack.c.l.b16 %v33
  %v170 = vunpack.c.l.b16 %v34
  %v171 = vunpack.c.l.b16 %v35
  %v172 = vunpack.c.l.b16 %v36
  %v173 = vunpack.c.l.b16 %v37
  %v174 = vunpack.c.l.b16 %v38
  %v175 = vunpack.c.l.b16 %v39
  %v176 = vunpack.c.l.b16 %v40
  %v177 = vunpack.c.l.b16 %v41
  %v178 = vunpack.c.l.b16 %v42
  %v179 = vunpack.c.l.b16 %v43
  %v180 = vunpack.c.l.b16 %v44
  %v181 = vunpack.c.l.b16 %v45
  %v182 = vunpack.c.l.b16 %v46
  %v183 = vunpack.c.l.b16 %v47
  %v184 = vunpack.c.l.b16 %v48
  %v185 = vunpack.c.l.b16 %v49
  %v186 = vunpack.c.l.b16 %v50
  %v187 = vunpack.c.l.b16 %v51
  %v188 = vunpack.c.l.b16 %v52
  %v189 = vunpack.c.l.b16 %v53
  %v190 = vunpack.c.l.b16 %v54
  %v191 = vunpack.c.l.b16 %v55
  %v192 = vunpack.c.l.b16 %v56
  %v193 = vunpack.c.l.b16 %v57
  %v194 = vunpack.c.l.b16 %v58
  %v195 = vunpack.c.l.b16 %v59
  %v196 = vunpack.c.l.b16 %v60
  %v197 = vunpack.c.l.b16 %v61
  %v198 = vunpack.c.l.b16 %v62
  %v199 = vunpack.c.l.b16 %v63
  %v200 = vunpack.c.l.b16 %v64
  %v201 = vunpack.c.l.b16 %v65
  %v202 = vunpack.c.l.b16 %v66
  %v203 = vunpack.c.l.b16 %v67
  %v204 = vunpack.c.l.b16 %v68
  %v205 = vunpack.c.l.b16 %v69
  %v206 = vunpack.c.l.b16 %v70
  %v207 = vunpack.c.l.b16 %v71
  %v208 = vunpack.c.l.b16 %v72
  %v209 = vunpack.c.l.b16 %v73
  %v210 = vunpack.c.l.b16 %v74
  %v211 = vunpack.c.l.b16 %v75
  %v212 = vunpack.c.l.b16 %v76
  %v213 = vunpack.c.l.b16 %v77
  %v214 = vunpack.c.l.b16 %v78
  %v215 = vunpack.c.l.b16 %v79
  %v216 = vunpack.c.l.b16 %v80
  %v217 = vunpack.c.l.b16 %v81
  %v218 = vunpack.c.l.b16 %v82
  %v219 = vunpack.c.l.b16 %v83
  %v220 = vunpack.c.l.b16 %v84
  %v221 = vunpack.c.l.b16 %v85
  %v222 = vunpack.c.l.b16 %v86
  %v223 = vpack.c.b16 %v160, %v159
  %v224 = vpack.c.b16 %v162, %v161
  %v225 = vpack.c.b16 %v164, %v163
  %v226 = vpack.c.b16 %v166, %v165
  %v227 = vpack.c.b16 %v168, %v167
  %v228 = vpack.c.b16 %v170, %v169
  %v229 = vpack.c.b16 %v172, %v171
  %v230 = vpack.c.b16 %v174, %v173
  %v231 = vpack.c.b16 %v176, %v175
  %v232 = vpack.c.b16 %v178, %v177
  %v233 = vpack.c.b16 %v180, %v179
  %v234 = vpack.c.b16 %v182, %v181
  %v235 = vpack.c.b16 %v184, %v183
  %v236 = vpack.c.b16 %v186, %v185
  %v237 = vpack.c.b16 %v188, %v187
  %v238 = vpack.c.b16 %v190, %v189
  %v239 = vpack.c.b16 %v192, %v191
  %v240 = vpack.c.b16 %v194, %v193
  %v241 = vpack.c.b16 %v196, %v195
  %v242 = vpack.c.b16 %v198, %v197
  %v243 = vpack.c.b16 %v200, %v199
  %v244 = vpack.c.b16 %v202, %v201
  %v245 = vpack.c.b16 %v204, %v203
  %v246 = vpack.c.b16 %v206, %v205
  %v247 = vpack.c.b16 %v208, %v207
  %v248 = vpack.c.b16 %v210, %v209
  %v249 = vpack.c.b16 %v212, %v211
  %v250 = vpack.c.b16 %v214, %v213
  %v251 = vpack.c.b16 %v216, %v215
  %v252 = vpack.c.b16 %v218, %v217
  %v253 = vpack.c.b16 %v220, %v219
  %v254 = vpack.c.b16 %v222, %v221
  %vm255 = vcmask 31744
  %v257 = vsel %vm255, %v223, 0
  %v260 = vsel %vm255, %v224, 0
  %v263 = vsel %vm255, %v225, 0
  %v266 = vsel %vm255, %v226, 0
  %v269 = vsel %vm255, %v227, 0
  %v272 = vsel %vm255, %v228, 0
  %v275 = vsel %vm255, %v229, 0
  %v278 = vsel %vm255, %v230, 0
  %v281 = vsel %vm255, %v231, 0
  %v284 = vsel %vm255, %v232, 0
  %v287 = vsel %vm255, %v233, 0
  %v290 = vsel %vm255, %v234, 0
  %v293 = vsel %vm255, %v235, 0
  %v296 = vsel %vm255, %v236, 0
  %v299 = vsel %vm255, %v237, 0
  %v302 = vsel %vm255, %v238, 0
  %v305 = vsel %vm255, %v239, 0
  %v308 = vsel %vm255, %v240, 0
  %v311 = vsel %vm255, %v241, 0
  %v314 = vsel %vm255, %v242, 0
  %v317 = vsel %vm255, %v243, 0
  %v320 = vsel %vm255, %v244, 0
  %v323 = vsel %vm255, %v245, 0
  %v326 = vsel %vm255, %v246, 0
  %v329 = vsel %vm255, %v247, 0
  %v332 = vsel %vm255, %v248, 0
  %v335 = vsel %vm255, %v249, 0
  %v338 = vsel %vm255, %v250, 0
  %v341 = vsel %vm255, %v251, 0
  %v344 = vsel %vm255, %v252, 0
  %v347 = vsel %vm255, %v253, 0
  %v350 = vsel %vm255, %v254, 0
  %vm352 = vcmask 1041408
  %v354 = vsel %vm352, %v87, 0
  %356 = vmatprep.subr.bf16.mxu0 0
  %357 = vmatpush1.bf16.msra.mxu0 %v354
  %358 = vmatprep.subr.bf16.mxu0 0
  %359 = vmatpush1.bf16.msra.mxu0 0
  %360 = vmatprep.subr.bf16.mxu0 0
  %361 = vmatpush1.bf16.msra.mxu0 0
  %362 = vmatprep.subr.bf16.mxu0 0
  %363 = vmatpush1.bf16.msra.mxu0 0
  %364 = vmatprep.subr.bf16.mxu0 0
  %365 = vmatpush1.bf16.msra.mxu0 0
  %366 = vmatprep.subr.bf16.mxu0 0
  %367 = vmatpush1.bf16.msra.mxu0 0
  %368 = vmatprep.subr.bf16.mxu0 0
  %369 = vmatpush1.bf16.msra.mxu0 0
  %370 = vmatprep.subr.bf16.mxu0 0
  %371 = vmatpush1.bf16.msra.mxu0 0
  %372 = vmatprep.subr.bf16.mxu0 0
  %373 = vmatpush1.bf16.msra.mxu0 0
  %374 = vmatprep.subr.bf16.mxu0 0
  %375 = vmatpush1.bf16.msra.mxu0 0
  %376 = vmatprep.subr.bf16.mxu0 0
  %377 = vmatpush1.bf16.msra.mxu0 0
  %378 = vmatprep.subr.bf16.mxu0 0
  %379 = vmatpush1.bf16.msra.mxu0 0
  %380 = vmatprep.subr.bf16.mxu0 0
  %381 = vmatpush1.bf16.msra.mxu0 0
  %382 = vmatprep.subr.bf16.mxu0 0
  %383 = vmatpush1.bf16.msra.mxu0 0
  %384 = vmatprep.subr.bf16.mxu0 0
  %385 = vmatpush1.bf16.msra.mxu0 0
  %386 = vmatprep.subr.bf16.mxu0 0
  %387 = vmatpush1.bf16.msra.mxu0 0
  %388 = vmatprep.mubr.bf16.mxu0 0
  %389 = vmatmul.mubr.bf16.gmra.mrb[0].mxu0 %v257
  %v390 = vpop.f32.mrb[0].mxu0
  %v391 = vadd.f32 %v93, %v390
  %v392 = vpop.f32.mrb[0].mxu0
  %v393 = vpop.f32.mrb[0].mxu0
  %v394 = vadd.f32 %v93, %v393
  %v395 = vpop.f32.mrb[0].mxu0
  %396 = vmatprep.mubr.bf16.mxu0 0
  %397 = vmatmul.mubr.bf16.gmra.mrb[0].mxu0 %v260
  %v398 = vpop.f32.mrb[0].mxu0
  %v399 = vadd.f32 %v93, %v398
  %v400 = vpop.f32.mrb[0].mxu0
  %v401 = vpop.f32.mrb[0].mxu0
  %v402 = vadd.f32 %v93, %v401
  %v403 = vpop.f32.mrb[0].mxu0
  %404 = vmatprep.mubr.bf16.mxu0 0
  %405 = vmatmul.mubr.bf16.gmra.mrb[0].mxu0 %v263
  %v406 = vpop.f32.mrb[0].mxu0
  %v407 = vadd.f32 %v93, %v406
  %v408 = vpop.f32.mrb[0].mxu0
  %v409 = vpop.f32.mrb[0].mxu0
  %v410 = vadd.f32 %v93, %v409
  %v411 = vpop.f32.mrb[0].mxu0
  %412 = vmatprep.mubr.bf16.mxu0 0
  %413 = vmatmul.mubr.bf16.gmra.mrb[0].mxu0 %v266
  %v414 = vpop.f32.mrb[0].mxu0
  %v415 = vadd.f32 %v93, %v414
  %v416 = vpop.f32.mrb[0].mxu0
  %v417 = vpop.f32.mrb[0].mxu0
  %v418 = vadd.f32 %v93, %v417
  %v419 = vpop.f32.mrb[0].mxu0
  %420 = vmatprep.mubr.bf16.mxu0 0
  %421 = vmatmul.mubr.bf16.gmra.mrb[0].mxu0 %v269
  %v422 = vpop.f32.mrb[0].mxu0
  %v423 = vadd.f32 %v93, %v422
  %v424 = vpop.f32.mrb[0].mxu0
  %v425 = vpop.f32.mrb[0].mxu0
  %v426 = vadd.f32 %v93, %v425
  %v427 = vpop.f32.mrb[0].mxu0
  %428 = vmatprep.mubr.bf16.mxu0 0
  %429 = vmatmul.mubr.bf16.gmra.mrb[0].mxu0 %v272
  %v430 = vpop.f32.mrb[0].mxu0
  %v431 = vadd.f32 %v93, %v430
  %v432 = vpop.f32.mrb[0].mxu0
  %v433 = vpop.f32.mrb[0].mxu0
  %v434 = vadd.f32 %v93, %v433
  %v435 = vpop.f32.mrb[0].mxu0
  %436 = vmatprep.mubr.bf16.mxu0 0
  %437 = vmatmul.mubr.bf16.gmra.mrb[0].mxu0 %v275
  %v438 = vpop.f32.mrb[0].mxu0
  %v439 = vadd.f32 %v93, %v438
  %v440 = vpop.f32.mrb[0].mxu0
  %v441 = vpop.f32.mrb[0].mxu0
  %v442 = vadd.f32 %v93, %v441
  %v443 = vpop.f32.mrb[0].mxu0
  %444 = vmatprep.mubr.bf16.mxu0 0
  %445 = vmatmul.mubr.bf16.gmra.mrb[0].mxu0 %v278
  %v446 = vpop.f32.mrb[0].mxu0
  %v447 = vadd.f32 %v93, %v446
  %v448 = vpop.f32.mrb[0].mxu0
  %v449 = vpop.f32.mrb[0].mxu0
  %v450 = vadd.f32 %v93, %v449
  %v451 = vpop.f32.mrb[0].mxu0
  %452 = vmatprep.mubr.bf16.mxu0 0
  %453 = vmatmul.mubr.bf16.gmra.mrb[0].mxu0 %v281
  %v454 = vpop.f32.mrb[0].mxu0
  %v455 = vadd.f32 %v93, %v454
  %v456 = vpop.f32.mrb[0].mxu0
  %v457 = vpop.f32.mrb[0].mxu0
  %v458 = vadd.f32 %v93, %v457
  %v459 = vpop.f32.mrb[0].mxu0
  %460 = vmatprep.mubr.bf16.mxu0 0
  %461 = vmatmul.mubr.bf16.gmra.mrb[0].mxu0 %v284
  %v462 = vpop.f32.mrb[0].mxu0
  %v463 = vadd.f32 %v93, %v462
  %v464 = vpop.f32.mrb[0].mxu0
  %v465 = vpop.f32.mrb[0].mxu0
  %v466 = vadd.f32 %v93, %v465
  %v467 = vpop.f32.mrb[0].mxu0
  %468 = vmatprep.mubr.bf16.mxu0 0
  %469 = vmatmul.mubr.bf16.gmra.mrb[0].mxu0 %v287
  %v470 = vpop.f32.mrb[0].mxu0
  %v471 = vadd.f32 %v93, %v470
  %v472 = vpop.f32.mrb[0].mxu0
  %v473 = vpop.f32.mrb[0].mxu0
  %v474 = vadd.f32 %v93, %v473
  %v475 = vpop.f32.mrb[0].mxu0
  %476 = vmatprep.mubr.bf16.mxu0 0
  %477 = vmatmul.mubr.bf16.gmra.mrb[0].mxu0 %v290
  %v478 = vpop.f32.mrb[0].mxu0
  %v479 = vadd.f32 %v93, %v478
  %v480 = vpop.f32.mrb[0].mxu0
  %v481 = vpop.f32.mrb[0].mxu0
  %v482 = vadd.f32 %v93, %v481
  %v483 = vpop.f32.mrb[0].mxu0
  %484 = vmatprep.mubr.bf16.mxu0 0
  %485 = vmatmul.mubr.bf16.gmra.mrb[0].mxu0 %v293
  %v486 = vpop.f32.mrb[0].mxu0
  %v487 = vadd.f32 %v93, %v486
  %v488 = vpop.f32.mrb[0].mxu0
  %v489 = vpop.f32.mrb[0].mxu0
  %v490 = vadd.f32 %v93, %v489
  %v491 = vpop.f32.mrb[0].mxu0
  %492 = vmatprep.mubr.bf16.mxu0 0
  %493 = vmatmul.mubr.bf16.gmra.mrb[0].mxu0 %v296
  %v494 = vpop.f32.mrb[0].mxu0
  %v495 = vadd.f32 %v93, %v494
  %v496 = vpop.f32.mrb[0].mxu0
  %v497 = vpop.f32.mrb[0].mxu0
  %v498 = vadd.f32 %v93, %v497
  %v499 = vpop.f32.mrb[0].mxu0
  %500 = vmatprep.mubr.bf16.mxu0 0
  %501 = vmatmul.mubr.bf16.gmra.mrb[0].mxu0 %v299
  %v502 = vpop.f32.mrb[0].mxu0
  %v503 = vadd.f32 %v93, %v502
  %v504 = vpop.f32.mrb[0].mxu0
  %v505 = vpop.f32.mrb[0].mxu0
  %v506 = vadd.f32 %v93, %v505
  %v507 = vpop.f32.mrb[0].mxu0
  %508 = vmatprep.mubr.bf16.mxu0 0
  %509 = vmatmul.mubr.bf16.gmra.mrb[0].mxu0 %v302
  %v510 = vpop.f32.mrb[0].mxu0
  %v511 = vadd.f32 %v93, %v510
  %v512 = vpop.f32.mrb[0].mxu0
  %v513 = vpop.f32.mrb[0].mxu0
  %v514 = vadd.f32 %v93, %v513
  %v515 = vpop.f32.mrb[0].mxu0
  %516 = vmatprep.mubr.bf16.mxu0 0
  %517 = vmatmul.mubr.bf16.gmra.mrb[0].mxu0 %v305
  %v518 = vpop.f32.mrb[0].mxu0
  %v519 = vadd.f32 %v93, %v518
  %v520 = vpop.f32.mrb[0].mxu0
  %v521 = vpop.f32.mrb[0].mxu0
  %v522 = vadd.f32 %v93, %v521
  %v523 = vpop.f32.mrb[0].mxu0
  %524 = vmatprep.mubr.bf16.mxu0 0
  %525 = vmatmul.mubr.bf16.gmra.mrb[0].mxu0 %v308
  %v526 = vpop.f32.mrb[0].mxu0
  %v527 = vadd.f32 %v93, %v526
  %v528 = vpop.f32.mrb[0].mxu0
  %v529 = vpop.f32.mrb[0].mxu0
  %v530 = vadd.f32 %v93, %v529
  %v531 = vpop.f32.mrb[0].mxu0
  %532 = vmatprep.mubr.bf16.mxu0 0
  %533 = vmatmul.mubr.bf16.gmra.mrb[0].mxu0 %v311
  %v534 = vpop.f32.mrb[0].mxu0
  %v535 = vadd.f32 %v93, %v534
  %v536 = vpop.f32.mrb[0].mxu0
  %v537 = vpop.f32.mrb[0].mxu0
  %v538 = vadd.f32 %v93, %v537
  %v539 = vpop.f32.mrb[0].mxu0
  %540 = vmatprep.mubr.bf16.mxu0 0
  %541 = vmatmul.mubr.bf16.gmra.mrb[0].mxu0 %v314
  %v542 = vpop.f32.mrb[0].mxu0
  %v543 = vadd.f32 %v93, %v542
  %v544 = vpop.f32.mrb[0].mxu0
  %v545 = vpop.f32.mrb[0].mxu0
  %v546 = vadd.f32 %v93, %v545
  %v547 = vpop.f32.mrb[0].mxu0
  %548 = vmatprep.mubr.bf16.mxu0 0
  %549 = vmatmul.mubr.bf16.gmra.mrb[0].mxu0 %v317
  %v550 = vpop.f32.mrb[0].mxu0
  %v551 = vadd.f32 %v93, %v550
  %v552 = vpop.f32.mrb[0].mxu0
  %v553 = vpop.f32.mrb[0].mxu0
  %v554 = vadd.f32 %v93, %v553
  %v555 = vpop.f32.mrb[0].mxu0
  %556 = vmatprep.mubr.bf16.mxu0 0
  %557 = vmatmul.mubr.bf16.gmra.mrb[0].mxu0 %v320
  %v558 = vpop.f32.mrb[0].mxu0
  %v559 = vadd.f32 %v93, %v558
  %v560 = vpop.f32.mrb[0].mxu0
  %v561 = vpop.f32.mrb[0].mxu0
  %v562 = vadd.f32 %v93, %v561
  %v563 = vpop.f32.mrb[0].mxu0
  %564 = vmatprep.mubr.bf16.mxu0 0
  %565 = vmatmul.mubr.bf16.gmra.mrb[0].mxu0 %v323
  %v566 = vpop.f32.mrb[0].mxu0
  %v567 = vadd.f32 %v93, %v566
  %v568 = vpop.f32.mrb[0].mxu0
  %v569 = vpop.f32.mrb[0].mxu0
  %v570 = vadd.f32 %v93, %v569
  %v571 = vpop.f32.mrb[0].mxu0
  %572 = vmatprep.mubr.bf16.mxu0 0
  %573 = vmatmul.mubr.bf16.gmra.mrb[0].mxu0 %v326
  %v574 = vpop.f32.mrb[0].mxu0
  %v575 = vadd.f32 %v93, %v574
  %v576 = vpop.f32.mrb[0].mxu0
  %v577 = vpop.f32.mrb[0].mxu0
  %v578 = vadd.f32 %v93, %v577
  %v579 = vpop.f32.mrb[0].mxu0
  %580 = vmatprep.mubr.bf16.mxu0 0
  %581 = vmatmul.mubr.bf16.gmra.mrb[0].mxu0 %v329
  %v582 = vpop.f32.mrb[0].mxu0
  %v583 = vadd.f32 %v93, %v582
  %v584 = vpop.f32.mrb[0].mxu0
  %v585 = vpop.f32.mrb[0].mxu0
  %v586 = vadd.f32 %v93, %v585
  %v587 = vpop.f32.mrb[0].mxu0
  %588 = vmatprep.mubr.bf16.mxu0 0
  %589 = vmatmul.mubr.bf16.gmra.mrb[0].mxu0 %v332
  %v590 = vpop.f32.mrb[0].mxu0
  %v591 = vadd.f32 %v93, %v590
  %v592 = vpop.f32.mrb[0].mxu0
  %v593 = vpop.f32.mrb[0].mxu0
  %v594 = vadd.f32 %v93, %v593
  %v595 = vpop.f32.mrb[0].mxu0
  %596 = vmatprep.mubr.bf16.mxu0 0
  %597 = vmatmul.mubr.bf16.gmra.mrb[0].mxu0 %v335
  %v598 = vpop.f32.mrb[0].mxu0
  %v599 = vadd.f32 %v93, %v598
  %v600 = vpop.f32.mrb[0].mxu0
  %v601 = vpop.f32.mrb[0].mxu0
  %v602 = vadd.f32 %v93, %v601
  %v603 = vpop.f32.mrb[0].mxu0
  %604 = vmatprep.mubr.bf16.mxu0 0
  %605 = vmatmul.mubr.bf16.gmra.mrb[0].mxu0 %v338
  %v606 = vpop.f32.mrb[0].mxu0
  %v607 = vadd.f32 %v93, %v606
  %v608 = vpop.f32.mrb[0].mxu0
  %v609 = vpop.f32.mrb[0].mxu0
  %v610 = vadd.f32 %v93, %v609
  %v611 = vpop.f32.mrb[0].mxu0
  %612 = vmatprep.mubr.bf16.mxu0 0
  %613 = vmatmul.mubr.bf16.gmra.mrb[0].mxu0 %v341
  %v614 = vpop.f32.mrb[0].mxu0
  %v615 = vadd.f32 %v93, %v614
  %v616 = vpop.f32.mrb[0].mxu0
  %v617 = vpop.f32.mrb[0].mxu0
  %v618 = vadd.f32 %v93, %v617
  %v619 = vpop.f32.mrb[0].mxu0
  %620 = vmatprep.mubr.bf16.mxu0 0
  %621 = vmatmul.mubr.bf16.gmra.mrb[0].mxu0 %v344
  %v622 = vpop.f32.mrb[0].mxu0
  %v623 = vadd.f32 %v93, %v622
  %v624 = vpop.f32.mrb[0].mxu0
  %v625 = vpop.f32.mrb[0].mxu0
  %v626 = vadd.f32 %v93, %v625
  %v627 = vpop.f32.mrb[0].mxu0
  %628 = vmatprep.mubr.bf16.mxu0 0
  %629 = vmatmul.mubr.bf16.gmra.mrb[0].mxu0 %v347
  %v630 = vpop.f32.mrb[0].mxu0
  %v631 = vadd.f32 %v93, %v630
  %v632 = vpop.f32.mrb[0].mxu0
  %v633 = vpop.f32.mrb[0].mxu0
  %v634 = vadd.f32 %v93, %v633
  %v635 = vpop.f32.mrb[0].mxu0
  %636 = vmatprep.mubr.bf16.mxu0 0
  %637 = vmatmul.mubr.bf16.gmra.mrb[0].mxu0 %v350
  %v638 = vpop.f32.mrb[0].mxu0
  %v639 = vadd.f32 %v93, %v638
  %v640 = vpop.f32.mrb[0].mxu0
  %v641 = vpop.f32.mrb[0].mxu0
  %v642 = vadd.f32 %v93, %v641
  %v643 = vpop.f32.mrb[0].mxu0
  %644 = vdwg.mxu0
  %v645 = vmax.f32 %v391, 0.0
  %v646 = vmax.f32 %v394, 0.0
  %v647 = vmax.f32 %v399, 0.0
  %v648 = vmax.f32 %v402, 0.0
  %v649 = vmax.f32 %v407, 0.0
  %v650 = vmax.f32 %v410, 0.0
  %v651 = vmax.f32 %v415, 0.0
  %v652 = vmax.f32 %v418, 0.0
  %v653 = vmax.f32 %v423, 0.0
  %v654 = vmax.f32 %v426, 0.0
  %v655 = vmax.f32 %v431, 0.0
  %v656 = vmax.f32 %v434, 0.0
  %v657 = vmax.f32 %v439, 0.0
  %v658 = vmax.f32 %v442, 0.0
  %v659 = vmax.f32 %v447, 0.0
  %v660 = vmax.f32 %v450, 0.0
  %v661 = vmax.f32 %v455, 0.0
  %v662 = vmax.f32 %v458, 0.0
  %v663 = vmax.f32 %v463, 0.0
  %v664 = vmax.f32 %v466, 0.0
  %v665 = vmax.f32 %v471, 0.0
  %v666 = vmax.f32 %v474, 0.0
  %v667 = vmax.f32 %v479, 0.0
  %v668 = vmax.f32 %v482, 0.0
  %v669 = vmax.f32 %v487, 0.0
  %v670 = vmax.f32 %v490, 0.0
  %v671 = vmax.f32 %v495, 0.0
  %v672 = vmax.f32 %v498, 0.0
  %v673 = vmax.f32 %v503, 0.0
  %v674 = vmax.f32 %v506, 0.0
  %v675 = vmax.f32 %v511, 0.0
  %v676 = vmax.f32 %v514, 0.0
  %v677 = vmax.f32 %v519, 0.0
  %v678 = vmax.f32 %v522, 0.0
  %v679 = vmax.f32 %v527, 0.0
  %v680 = vmax.f32 %v530, 0.0
  %v681 = vmax.f32 %v535, 0.0
  %v682 = vmax.f32 %v538, 0.0
  %v683 = vmax.f32 %v543, 0.0
  %v684 = vmax.f32 %v546, 0.0
  %v685 = vmax.f32 %v551, 0.0
  %v686 = vmax.f32 %v554, 0.0
  %v687 = vmax.f32 %v559, 0.0
  %v688 = vmax.f32 %v562, 0.0
  %v689 = vmax.f32 %v567, 0.0
  %v690 = vmax.f32 %v570, 0.0
  %v691 = vmax.f32 %v575, 0.0
  %v692 = vmax.f32 %v578, 0.0
  %v693 = vmax.f32 %v583, 0.0
  %v694 = vmax.f32 %v586, 0.0
  %v695 = vmax.f32 %v591, 0.0
  %v696 = vmax.f32 %v594, 0.0
  %v697 = vmax.f32 %v599, 0.0
  %v698 = vmax.f32 %v602, 0.0
  %v699 = vmax.f32 %v607, 0.0
  %v700 = vmax.f32 %v610, 0.0
  %v701 = vmax.f32 %v615, 0.0
  %v702 = vmax.f32 %v618, 0.0
  %v703 = vmax.f32 %v623, 0.0
  %v704 = vmax.f32 %v626, 0.0
  %v705 = vmax.f32 %v631, 0.0
  %v706 = vmax.f32 %v634, 0.0
  %v707 = vmax.f32 %v639, 0.0
  %v708 = vmax.f32 %v642, 0.0
  %v709 = vpack.c.bf16 %v646, %v645
  %v710 = vpack.c.bf16 %v648, %v647
  %v711 = vpack.c.bf16 %v650, %v649
  %v712 = vpack.c.bf16 %v652, %v651
  %v713 = vpack.c.bf16 %v654, %v653
  %v714 = vpack.c.bf16 %v656, %v655
  %v715 = vpack.c.bf16 %v658, %v657
  %v716 = vpack.c.bf16 %v660, %v659
  %v717 = vpack.c.bf16 %v662, %v661
  %v718 = vpack.c.bf16 %v664, %v663
  %v719 = vpack.c.bf16 %v666, %v665
  %v720 = vpack.c.bf16 %v668, %v667
  %v721 = vpack.c.bf16 %v670, %v669
  %v722 = vpack.c.bf16 %v672, %v671
  %v723 = vpack.c.bf16 %v674, %v673
  %v724 = vpack.c.bf16 %v676, %v675
  %v725 = vpack.c.bf16 %v678, %v677
  %v726 = vpack.c.bf16 %v680, %v679
  %v727 = vpack.c.bf16 %v682, %v681
  %v728 = vpack.c.bf16 %v684, %v683
  %v729 = vpack.c.bf16 %v686, %v685
  %v730 = vpack.c.bf16 %v688, %v687
  %v731 = vpack.c.bf16 %v690, %v689
  %v732 = vpack.c.bf16 %v692, %v691
  %v733 = vpack.c.bf16 %v694, %v693
  %v734 = vpack.c.bf16 %v696, %v695
  %v735 = vpack.c.bf16 %v698, %v697
  %v736 = vpack.c.bf16 %v700, %v699
  %v737 = vpack.c.bf16 %v702, %v701
  %v738 = vpack.c.bf16 %v704, %v703
  %v739 = vpack.c.bf16 %v706, %v705
  %v740 = vpack.c.bf16 %v708, %v707
  %v773 = vunpack.c.l.b16 %v709
  %v774 = vunpack.c.h.b16 %v709
  %v775 = vunpack.c.l.b16 %v710
  %v776 = vunpack.c.h.b16 %v710
  %v777 = vunpack.c.l.b16 %v711
  %v778 = vunpack.c.h.b16 %v711
  %v779 = vunpack.c.l.b16 %v712
  %v780 = vunpack.c.h.b16 %v712
  %v781 = vunpack.c.l.b16 %v713
  %v782 = vunpack.c.h.b16 %v713
  %v783 = vunpack.c.l.b16 %v714
  %v784 = vunpack.c.h.b16 %v714
  %v785 = vunpack.c.l.b16 %v715
  %v786 = vunpack.c.h.b16 %v715
  %v787 = vunpack.c.l.b16 %v716
  %v788 = vunpack.c.h.b16 %v716
  %v789 = vunpack.c.l.b16 %v717
  %v790 = vunpack.c.h.b16 %v717
  %v791 = vunpack.c.l.b16 %v718
  %v792 = vunpack.c.h.b16 %v718
  %v793 = vunpack.c.l.b16 %v719
  %v794 = vunpack.c.h.b16 %v719
  %v795 = vunpack.c.l.b16 %v720
  %v796 = vunpack.c.h.b16 %v720
  %v797 = vunpack.c.l.b16 %v721
  %v798 = vunpack.c.h.b16 %v721
  %v799 = vunpack.c.l.b16 %v722
  %v800 = vunpack.c.h.b16 %v722
  %v801 = vunpack.c.l.b16 %v723
  %v802 = vunpack.c.h.b16 %v723
  %v803 = vunpack.c.l.b16 %v724
  %v804 = vunpack.c.h.b16 %v724
  %v805 = vunpack.c.l.b16 %v725
  %v806 = vunpack.c.h.b16 %v725
  %v807 = vunpack.c.l.b16 %v726
  %v808 = vunpack.c.h.b16 %v726
  %v809 = vunpack.c.l.b16 %v727
  %v810 = vunpack.c.h.b16 %v727
  %v811 = vunpack.c.l.b16 %v728
  %v812 = vunpack.c.h.b16 %v728
  %v813 = vunpack.c.l.b16 %v729
  %v814 = vunpack.c.h.b16 %v729
  %v815 = vunpack.c.l.b16 %v730
  %v816 = vunpack.c.h.b16 %v730
  %v817 = vunpack.c.l.b16 %v731
  %v818 = vunpack.c.h.b16 %v731
  %v819 = vunpack.c.l.b16 %v732
  %v820 = vunpack.c.h.b16 %v732
  %v821 = vunpack.c.l.b16 %v733
  %v822 = vunpack.c.h.b16 %v733
  %v823 = vunpack.c.l.b16 %v734
  %v824 = vunpack.c.h.b16 %v734
  %v825 = vunpack.c.l.b16 %v735
  %v826 = vunpack.c.h.b16 %v735
  %v827 = vunpack.c.l.b16 %v736
  %v828 = vunpack.c.h.b16 %v736
  %v829 = vunpack.c.l.b16 %v737
  %v830 = vunpack.c.h.b16 %v737
  %v831 = vunpack.c.l.b16 %v738
  %v832 = vunpack.c.h.b16 %v738
  %v833 = vunpack.c.l.b16 %v739
  %v834 = vunpack.c.h.b16 %v739
  %v835 = vunpack.c.l.b16 %v740
  %v836 = vunpack.c.h.b16 %v740
  %v837 = vpack.c.b16 %v773, %v773
  %v838 = vpack.c.b16 %v774, %v774
  %v839 = vpack.c.b16 %v775, %v775
  %v840 = vpack.c.b16 %v776, %v776
  %v841 = vpack.c.b16 %v777, %v777
  %v842 = vpack.c.b16 %v778, %v778
  %v843 = vpack.c.b16 %v779, %v779
  %v844 = vpack.c.b16 %v780, %v780
  %v845 = vpack.c.b16 %v781, %v781
  %v846 = vpack.c.b16 %v782, %v782
  %v847 = vpack.c.b16 %v783, %v783
  %v848 = vpack.c.b16 %v784, %v784
  %v849 = vpack.c.b16 %v785, %v785
  %v850 = vpack.c.b16 %v786, %v786
  %v851 = vpack.c.b16 %v787, %v787
  %v852 = vpack.c.b16 %v788, %v788
  %v853 = vpack.c.b16 %v789, %v789
  %v854 = vpack.c.b16 %v790, %v790
  %v855 = vpack.c.b16 %v791, %v791
  %v856 = vpack.c.b16 %v792, %v792
  %v857 = vpack.c.b16 %v793, %v793
  %v858 = vpack.c.b16 %v794, %v794
  %v859 = vpack.c.b16 %v795, %v795
  %v860 = vpack.c.b16 %v796, %v796
  %v861 = vpack.c.b16 %v797, %v797
  %v862 = vpack.c.b16 %v798, %v798
  %v863 = vpack.c.b16 %v799, %v799
  %v864 = vpack.c.b16 %v800, %v800
  %v865 = vpack.c.b16 %v801, %v801
  %v866 = vpack.c.b16 %v802, %v802
  %v867 = vpack.c.b16 %v803, %v803
  %v868 = vpack.c.b16 %v804, %v804
  %v869 = vpack.c.b16 %v805, %v805
  %v870 = vpack.c.b16 %v806, %v806
  %v871 = vpack.c.b16 %v807, %v807
  %v872 = vpack.c.b16 %v808, %v808
  %v873 = vpack.c.b16 %v809, %v809
  %v874 = vpack.c.b16 %v810, %v810
  %v875 = vpack.c.b16 %v811, %v811
  %v876 = vpack.c.b16 %v812, %v812
  %v877 = vpack.c.b16 %v813, %v813
  %v878 = vpack.c.b16 %v814, %v814
  %v879 = vpack.c.b16 %v815, %v815
  %v880 = vpack.c.b16 %v816, %v816
  %v881 = vpack.c.b16 %v817, %v817
  %v882 = vpack.c.b16 %v818, %v818
  %v883 = vpack.c.b16 %v819, %v819
  %v884 = vpack.c.b16 %v820, %v820
  %v885 = vpack.c.b16 %v821, %v821
  %v886 = vpack.c.b16 %v822, %v822
  %v887 = vpack.c.b16 %v823, %v823
  %v888 = vpack.c.b16 %v824, %v824
  %v889 = vpack.c.b16 %v825, %v825
  %v890 = vpack.c.b16 %v826, %v826
  %v891 = vpack.c.b16 %v827, %v827
  %v892 = vpack.c.b16 %v828, %v828
  %v893 = vpack.c.b16 %v829, %v829
  %v894 = vpack.c.b16 %v830, %v830
  %v895 = vpack.c.b16 %v831, %v831
  %v896 = vpack.c.b16 %v832, %v832
  %v897 = vpack.c.b16 %v833, %v833
  %v898 = vpack.c.b16 %v834, %v834
  %v899 = vpack.c.b16 %v835, %v835
  %v900 = vpack.c.b16 %v836, %v836
  %vm965 = vcmask 60416
  %966 = vst.msk [vmem:[%s5] sm:$0xf] %vm965, %v837
  %967 = vst.msk [vmem:[%s5 + $0x4] sm:$0xf] %vm965, %v838
  %968 = vst.msk [vmem:[%s5 + $0x8] sm:$0xf] %vm965, %v839
  %969 = vst.msk [vmem:[%s5 + $0xc] sm:$0xf] %vm965, %v840
  %970 = vst.msk [vmem:[%s5 + $0x10] sm:$0xf] %vm965, %v841
  %971 = vst.msk [vmem:[%s5 + $0x14] sm:$0xf] %vm965, %v842
  %972 = vst.msk [vmem:[%s5 + $0x18] sm:$0xf] %vm965, %v843
  %973 = vst.msk [vmem:[%s5 + $0x1c] sm:$0xf] %vm965, %v844
  %974 = vst.msk [vmem:[%s5 + $0x20] sm:$0xf] %vm965, %v845
  %975 = vst.msk [vmem:[%s5 + $0x24] sm:$0xf] %vm965, %v846
  %976 = vst.msk [vmem:[%s5 + $0x28] sm:$0xf] %vm965, %v847
  %977 = vst.msk [vmem:[%s5 + $0x2c] sm:$0xf] %vm965, %v848
  %978 = vst.msk [vmem:[%s5 + $0x30] sm:$0xf] %vm965, %v849
  %979 = vst.msk [vmem:[%s5 + $0x34] sm:$0xf] %vm965, %v850
  %980 = vst.msk [vmem:[%s5 + $0x38] sm:$0xf] %vm965, %v851
  %981 = vst.msk [vmem:[%s5 + $0x3c] sm:$0xf] %vm965, %v852
  %982 = vst.msk [vmem:[%s5 + $0x40] sm:$0xf] %vm965, %v853
  %983 = vst.msk [vmem:[%s5 + $0x44] sm:$0xf] %vm965, %v854
  %984 = vst.msk [vmem:[%s5 + $0x48] sm:$0xf] %vm965, %v855
  %985 = vst.msk [vmem:[%s5 + $0x4c] sm:$0xf] %vm965, %v856
  %986 = vst.msk [vmem:[%s5 + $0x50] sm:$0xf] %vm965, %v857
  %987 = vst.msk [vmem:[%s5 + $0x54] sm:$0xf] %vm965, %v858
  %988 = vst.msk [vmem:[%s5 + $0x58] sm:$0xf] %vm965, %v859
  %989 = vst.msk [vmem:[%s5 + $0x5c] sm:$0xf] %vm965, %v860
  %990 = vst.msk [vmem:[%s5 + $0x60] sm:$0xf] %vm965, %v861
  %991 = vst.msk [vmem:[%s5 + $0x64] sm:$0xf] %vm965, %v862
  %992 = vst.msk [vmem:[%s5 + $0x68] sm:$0xf] %vm965, %v863
  %993 = vst.msk [vmem:[%s5 + $0x6c] sm:$0xf] %vm965, %v864
  %994 = vst.msk [vmem:[%s5 + $0x70] sm:$0xf] %vm965, %v865
  %995 = vst.msk [vmem:[%s5 + $0x74] sm:$0xf] %vm965, %v866
  %996 = vst.msk [vmem:[%s5 + $0x78] sm:$0xf] %vm965, %v867
  %997 = vst.msk [vmem:[%s5 + $0x7c] sm:$0xf] %vm965, %v868
  %998 = vst.msk [vmem:[%s5 + $0x80] sm:$0xf] %vm965, %v869
  %999 = vst.msk [vmem:[%s5 + $0x84] sm:$0xf] %vm965, %v870
  %1000 = vst.msk [vmem:[%s5 + $0x88] sm:$0xf] %vm965, %v871
  %1001 = vst.msk [vmem:[%s5 + $0x8c] sm:$0xf] %vm965, %v872
  %1002 = vst.msk [vmem:[%s5 + $0x90] sm:$0xf] %vm965, %v873
  %1003 = vst.msk [vmem:[%s5 + $0x94] sm:$0xf] %vm965, %v874
  %1004 = vst.msk [vmem:[%s5 + $0x98] sm:$0xf] %vm965, %v875
  %1005 = vst.msk [vmem:[%s5 + $0x9c] sm:$0xf] %vm965, %v876
  %1006 = vst.msk [vmem:[%s5 + $0xa0] sm:$0xf] %vm965, %v877
  %1007 = vst.msk [vmem:[%s5 + $0xa4] sm:$0xf] %vm965, %v878
  %1008 = vst.msk [vmem:[%s5 + $0xa8] sm:$0xf] %vm965, %v879
  %1009 = vst.msk [vmem:[%s5 + $0xac] sm:$0xf] %vm965, %v880
  %1010 = vst.msk [vmem:[%s5 + $0xb0] sm:$0xf] %vm965, %v881
  %1011 = vst.msk [vmem:[%s5 + $0xb4] sm:$0xf] %vm965, %v882
  %1012 = vst.msk [vmem:[%s5 + $0xb8] sm:$0xf] %vm965, %v883
  %1013 = vst.msk [vmem:[%s5 + $0xbc] sm:$0xf] %vm965, %v884
  %1014 = vst.msk [vmem:[%s5 + $0xc0] sm:$0xf] %vm965, %v885
  %1015 = vst.msk [vmem:[%s5 + $0xc4] sm:$0xf] %vm965, %v886
  %1016 = vst.msk [vmem:[%s5 + $0xc8] sm:$0xf] %vm965, %v887
  %1017 = vst.msk [vmem:[%s5 + $0xcc] sm:$0xf] %vm965, %v888
  %1018 = vst.msk [vmem:[%s5 + $0xd0] sm:$0xf] %vm965, %v889
  %1019 = vst.msk [vmem:[%s5 + $0xd4] sm:$0xf] %vm965, %v890
  %1020 = vst.msk [vmem:[%s5 + $0xd8] sm:$0xf] %vm965, %v891
  %1021 = vst.msk [vmem:[%s5 + $0xdc] sm:$0xf] %vm965, %v892
  %1022 = vst.msk [vmem:[%s5 + $0xe0] sm:$0xf] %vm965, %v893
  %1023 = vst.msk [vmem:[%s5 + $0xe4] sm:$0xf] %vm965, %v894
  %1024 = vst.msk [vmem:[%s5 + $0xe8] sm:$0xf] %vm965, %v895
  %1025 = vst.msk [vmem:[%s5 + $0xec] sm:$0xf] %vm965, %v896
  %1026 = vst.msk [vmem:[%s5 + $0xf0] sm:$0xf] %vm965, %v897
  %1027 = vst.msk [vmem:[%s5 + $0xf4] sm:$0xf] %vm965, %v898
  %1028 = vst.msk [vmem:[%s5 + $0xf8] sm:$0xf] %vm965, %v899
  %1029 = vst.msk [vmem:[%s5 + $0xfc] sm:$0xf] %vm965, %v900
  %v1030 = vld [vmem:[%s3] sm:$0x3]
  %v1031 = vld [vmem:[%s4] sm:$0x1]
  %v1033 = vlaneseq
  %v1034 = vshrl.u32 %v1033, 7
  %v1035 = vsub.s32 0, %v1034
  %v1036 = vrot.slane %v1031, %v1035
  %v1039 = vsel %vm352, %v1030, 0
  %1041 = vmatprep.subr.bf16.mxu0 0
  %1042 = vmatpush1.bf16.msra.mxu0 %v1039
  %1043 = vmatprep.subr.bf16.mxu0 0
  %1044 = vmatpush1.bf16.msra.mxu0 0
  %1045 = vmatprep.subr.bf16.mxu0 0
  %1046 = vmatpush1.bf16.msra.mxu0 0
  %1047 = vmatprep.subr.bf16.mxu0 0
  %1048 = vmatpush1.bf16.msra.mxu0 0
  %1049 = vmatprep.subr.bf16.mxu0 0
  %1050 = vmatpush1.bf16.msra.mxu0 0
  %1051 = vmatprep.subr.bf16.mxu0 0
  %1052 = vmatpush1.bf16.msra.mxu0 0
  %1053 = vmatprep.subr.bf16.mxu0 0
  %1054 = vmatpush1.bf16.msra.mxu0 0
  %1055 = vmatprep.subr.bf16.mxu0 0
  %1056 = vmatpush1.bf16.msra.mxu0 0
  %1057 = vmatprep.subr.bf16.mxu0 0
  %1058 = vmatpush1.bf16.msra.mxu0 0
  %1059 = vmatprep.subr.bf16.mxu0 0
  %1060 = vmatpush1.bf16.msra.mxu0 0
  %1061 = vmatprep.subr.bf16.mxu0 0
  %1062 = vmatpush1.bf16.msra.mxu0 0
  %1063 = vmatprep.subr.bf16.mxu0 0
  %1064 = vmatpush1.bf16.msra.mxu0 0
  %1065 = vmatprep.subr.bf16.mxu0 0
  %1066 = vmatpush1.bf16.msra.mxu0 0
  %1067 = vmatprep.subr.bf16.mxu0 0
  %1068 = vmatpush1.bf16.msra.mxu0 0
  %1069 = vmatprep.subr.bf16.mxu0 0
  %1070 = vmatpush1.bf16.msra.mxu0 0
  %1071 = vmatprep.subr.bf16.mxu0 0
  %1072 = vmatpush1.bf16.msra.mxu0 0
  %1073 = vmatprep.mubr.bf16.mxu0 0
  %1074 = vmatmul.mubr.bf16.gmra.mrb[0].mxu0 %v257
  %v1075 = vpop.f32.mrb[0].mxu0
  %v1076 = vadd.f32 %v1036, %v1075
  %v1077 = vpop.f32.mrb[0].mxu0
  %v1078 = vpop.f32.mrb[0].mxu0
  %v1079 = vadd.f32 %v1036, %v1078
  %v1080 = vpop.f32.mrb[0].mxu0
  %1081 = vmatprep.mubr.bf16.mxu0 0
  %1082 = vmatmul.mubr.bf16.gmra.mrb[0].mxu0 %v260
  %v1083 = vpop.f32.mrb[0].mxu0
  %v1084 = vadd.f32 %v1036, %v1083
  %v1085 = vpop.f32.mrb[0].mxu0
  %v1086 = vpop.f32.mrb[0].mxu0
  %v1087 = vadd.f32 %v1036, %v1086
  %v1088 = vpop.f32.mrb[0].mxu0
  %1089 = vmatprep.mubr.bf16.mxu0 0
  %1090 = vmatmul.mubr.bf16.gmra.mrb[0].mxu0 %v263
  %v1091 = vpop.f32.mrb[0].mxu0
  %v1092 = vadd.f32 %v1036, %v1091
  %v1093 = vpop.f32.mrb[0].mxu0
  %v1094 = vpop.f32.mrb[0].mxu0
  %v1095 = vadd.f32 %v1036, %v1094
  %v1096 = vpop.f32.mrb[0].mxu0
  %1097 = vmatprep.mubr.bf16.mxu0 0
  %1098 = vmatmul.mubr.bf16.gmra.mrb[0].mxu0 %v266
  %v1099 = vpop.f32.mrb[0].mxu0
  %v1100 = vadd.f32 %v1036, %v1099
  %v1101 = vpop.f32.mrb[0].mxu0
  %v1102 = vpop.f32.mrb[0].mxu0
  %v1103 = vadd.f32 %v1036, %v1102
  %v1104 = vpop.f32.mrb[0].mxu0
  %1105 = vmatprep.mubr.bf16.mxu0 0
  %1106 = vmatmul.mubr.bf16.gmra.mrb[0].mxu0 %v269
  %v1107 = vpop.f32.mrb[0].mxu0
  %v1108 = vadd.f32 %v1036, %v1107
  %v1109 = vpop.f32.mrb[0].mxu0
  %v1110 = vpop.f32.mrb[0].mxu0
  %v1111 = vadd.f32 %v1036, %v1110
  %v1112 = vpop.f32.mrb[0].mxu0
  %1113 = vmatprep.mubr.bf16.mxu0 0
  %1114 = vmatmul.mubr.bf16.gmra.mrb[0].mxu0 %v272
  %v1115 = vpop.f32.mrb[0].mxu0
  %v1116 = vadd.f32 %v1036, %v1115
  %v1117 = vpop.f32.mrb[0].mxu0
  %v1118 = vpop.f32.mrb[0].mxu0
  %v1119 = vadd.f32 %v1036, %v1118
  %v1120 = vpop.f32.mrb[0].mxu0
  %1121 = vmatprep.mubr.bf16.mxu0 0
  %1122 = vmatmul.mubr.bf16.gmra.mrb[0].mxu0 %v275
  %v1123 = vpop.f32.mrb[0].mxu0
  %v1124 = vadd.f32 %v1036, %v1123
  %v1125 = vpop.f32.mrb[0].mxu0
  %v1126 = vpop.f32.mrb[0].mxu0
  %v1127 = vadd.f32 %v1036, %v1126
  %v1128 = vpop.f32.mrb[0].mxu0
  %1129 = vmatprep.mubr.bf16.mxu0 0
  %1130 = vmatmul.mubr.bf16.gmra.mrb[0].mxu0 %v278
  %v1131 = vpop.f32.mrb[0].mxu0
  %v1132 = vadd.f32 %v1036, %v1131
  %v1133 = vpop.f32.mrb[0].mxu0
  %v1134 = vpop.f32.mrb[0].mxu0
  %v1135 = vadd.f32 %v1036, %v1134
  %v1136 = vpop.f32.mrb[0].mxu0
  %1137 = vmatprep.mubr.bf16.mxu0 0
  %1138 = vmatmul.mubr.bf16.gmra.mrb[0].mxu0 %v281
  %v1139 = vpop.f32.mrb[0].mxu0
  %v1140 = vadd.f32 %v1036, %v1139
  %v1141 = vpop.f32.mrb[0].mxu0
  %v1142 = vpop.f32.mrb[0].mxu0
  %v1143 = vadd.f32 %v1036, %v1142
  %v1144 = vpop.f32.mrb[0].mxu0
  %1145 = vmatprep.mubr.bf16.mxu0 0
  %1146 = vmatmul.mubr.bf16.gmra.mrb[0].mxu0 %v284
  %v1147 = vpop.f32.mrb[0].mxu0
  %v1148 = vadd.f32 %v1036, %v1147
  %v1149 = vpop.f32.mrb[0].mxu0
  %v1150 = vpop.f32.mrb[0].mxu0
  %v1151 = vadd.f32 %v1036, %v1150
  %v1152 = vpop.f32.mrb[0].mxu0
  %1153 = vmatprep.mubr.bf16.mxu0 0
  %1154 = vmatmul.mubr.bf16.gmra.mrb[0].mxu0 %v287
  %v1155 = vpop.f32.mrb[0].mxu0
  %v1156 = vadd.f32 %v1036, %v1155
  %v1157 = vpop.f32.mrb[0].mxu0
  %v1158 = vpop.f32.mrb[0].mxu0
  %v1159 = vadd.f32 %v1036, %v1158
  %v1160 = vpop.f32.mrb[0].mxu0
  %1161 = vmatprep.mubr.bf16.mxu0 0
  %1162 = vmatmul.mubr.bf16.gmra.mrb[0].mxu0 %v290
  %v1163 = vpop.f32.mrb[0].mxu0
  %v1164 = vadd.f32 %v1036, %v1163
  %v1165 = vpop.f32.mrb[0].mxu0
  %v1166 = vpop.f32.mrb[0].mxu0
  %v1167 = vadd.f32 %v1036, %v1166
  %v1168 = vpop.f32.mrb[0].mxu0
  %1169 = vmatprep.mubr.bf16.mxu0 0
  %1170 = vmatmul.mubr.bf16.gmra.mrb[0].mxu0 %v293
  %v1171 = vpop.f32.mrb[0].mxu0
  %v1172 = vadd.f32 %v1036, %v1171
  %v1173 = vpop.f32.mrb[0].mxu0
  %v1174 = vpop.f32.mrb[0].mxu0
  %v1175 = vadd.f32 %v1036, %v1174
  %v1176 = vpop.f32.mrb[0].mxu0
  %1177 = vmatprep.mubr.bf16.mxu0 0
  %1178 = vmatmul.mubr.bf16.gmra.mrb[0].mxu0 %v296
  %v1179 = vpop.f32.mrb[0].mxu0
  %v1180 = vadd.f32 %v1036, %v1179
  %v1181 = vpop.f32.mrb[0].mxu0
  %v1182 = vpop.f32.mrb[0].mxu0
  %v1183 = vadd.f32 %v1036, %v1182
  %v1184 = vpop.f32.mrb[0].mxu0
  %1185 = vmatprep.mubr.bf16.mxu0 0
  %1186 = vmatmul.mubr.bf16.gmra.mrb[0].mxu0 %v299
  %v1187 = vpop.f32.mrb[0].mxu0
  %v1188 = vadd.f32 %v1036, %v1187
  %v1189 = vpop.f32.mrb[0].mxu0
  %v1190 = vpop.f32.mrb[0].mxu0
  %v1191 = vadd.f32 %v1036, %v1190
  %v1192 = vpop.f32.mrb[0].mxu0
  %1193 = vmatprep.mubr.bf16.mxu0 0
  %1194 = vmatmul.mubr.bf16.gmra.mrb[0].mxu0 %v302
  %v1195 = vpop.f32.mrb[0].mxu0
  %v1196 = vadd.f32 %v1036, %v1195
  %v1197 = vpop.f32.mrb[0].mxu0
  %v1198 = vpop.f32.mrb[0].mxu0
  %v1199 = vadd.f32 %v1036, %v1198
  %v1200 = vpop.f32.mrb[0].mxu0
  %1201 = vmatprep.mubr.bf16.mxu0 0
  %1202 = vmatmul.mubr.bf16.gmra.mrb[0].mxu0 %v305
  %v1203 = vpop.f32.mrb[0].mxu0
  %v1204 = vadd.f32 %v1036, %v1203
  %v1205 = vpop.f32.mrb[0].mxu0
  %v1206 = vpop.f32.mrb[0].mxu0
  %v1207 = vadd.f32 %v1036, %v1206
  %v1208 = vpop.f32.mrb[0].mxu0
  %1209 = vmatprep.mubr.bf16.mxu0 0
  %1210 = vmatmul.mubr.bf16.gmra.mrb[0].mxu0 %v308
  %v1211 = vpop.f32.mrb[0].mxu0
  %v1212 = vadd.f32 %v1036, %v1211
  %v1213 = vpop.f32.mrb[0].mxu0
  %v1214 = vpop.f32.mrb[0].mxu0
  %v1215 = vadd.f32 %v1036, %v1214
  %v1216 = vpop.f32.mrb[0].mxu0
  %1217 = vmatprep.mubr.bf16.mxu0 0
  %1218 = vmatmul.mubr.bf16.gmra.mrb[0].mxu0 %v311
  %v1219 = vpop.f32.mrb[0].mxu0
  %v1220 = vadd.f32 %v1036, %v1219
  %v1221 = vpop.f32.mrb[0].mxu0
  %v1222 = vpop.f32.mrb[0].mxu0
  %v1223 = vadd.f32 %v1036, %v1222
  %v1224 = vpop.f32.mrb[0].mxu0
  %1225 = vmatprep.mubr.bf16.mxu0 0
  %1226 = vmatmul.mubr.bf16.gmra.mrb[0].mxu0 %v314
  %v1227 = vpop.f32.mrb[0].mxu0
  %v1228 = vadd.f32 %v1036, %v1227
  %v1229 = vpop.f32.mrb[0].mxu0
  %v1230 = vpop.f32.mrb[0].mxu0
  %v1231 = vadd.f32 %v1036, %v1230
  %v1232 = vpop.f32.mrb[0].mxu0
  %1233 = vmatprep.mubr.bf16.mxu0 0
  %1234 = vmatmul.mubr.bf16.gmra.mrb[0].mxu0 %v317
  %v1235 = vpop.f32.mrb[0].mxu0
  %v1236 = vadd.f32 %v1036, %v1235
  %v1237 = vpop.f32.mrb[0].mxu0
  %v1238 = vpop.f32.mrb[0].mxu0
  %v1239 = vadd.f32 %v1036, %v1238
  %v1240 = vpop.f32.mrb[0].mxu0
  %1241 = vmatprep.mubr.bf16.mxu0 0
  %1242 = vmatmul.mubr.bf16.gmra.mrb[0].mxu0 %v320
  %v1243 = vpop.f32.mrb[0].mxu0
  %v1244 = vadd.f32 %v1036, %v1243
  %v1245 = vpop.f32.mrb[0].mxu0
  %v1246 = vpop.f32.mrb[0].mxu0
  %v1247 = vadd.f32 %v1036, %v1246
  %v1248 = vpop.f32.mrb[0].mxu0
  %1249 = vmatprep.mubr.bf16.mxu0 0
  %1250 = vmatmul.mubr.bf16.gmra.mrb[0].mxu0 %v323
  %v1251 = vpop.f32.mrb[0].mxu0
  %v1252 = vadd.f32 %v1036, %v1251
  %v1253 = vpop.f32.mrb[0].mxu0
  %v1254 = vpop.f32.mrb[0].mxu0
  %v1255 = vadd.f32 %v1036, %v1254
  %v1256 = vpop.f32.mrb[0].mxu0
  %1257 = vmatprep.mubr.bf16.mxu0 0
  %1258 = vmatmul.mubr.bf16.gmra.mrb[0].mxu0 %v326
  %v1259 = vpop.f32.mrb[0].mxu0
  %v1260 = vadd.f32 %v1036, %v1259
  %v1261 = vpop.f32.mrb[0].mxu0
  %v1262 = vpop.f32.mrb[0].mxu0
  %v1263 = vadd.f32 %v1036, %v1262
  %v1264 = vpop.f32.mrb[0].mxu0
  %1265 = vmatprep.mubr.bf16.mxu0 0
  %1266 = vmatmul.mubr.bf16.gmra.mrb[0].mxu0 %v329
  %v1267 = vpop.f32.mrb[0].mxu0
  %v1268 = vadd.f32 %v1036, %v1267
  %v1269 = vpop.f32.mrb[0].mxu0
  %v1270 = vpop.f32.mrb[0].mxu0
  %v1271 = vadd.f32 %v1036, %v1270
  %v1272 = vpop.f32.mrb[0].mxu0
  %1273 = vmatprep.mubr.bf16.mxu0 0
  %1274 = vmatmul.mubr.bf16.gmra.mrb[0].mxu0 %v332
  %v1275 = vpop.f32.mrb[0].mxu0
  %v1276 = vadd.f32 %v1036, %v1275
  %v1277 = vpop.f32.mrb[0].mxu0
  %v1278 = vpop.f32.mrb[0].mxu0
  %v1279 = vadd.f32 %v1036, %v1278
  %v1280 = vpop.f32.mrb[0].mxu0
  %1281 = vmatprep.mubr.bf16.mxu0 0
  %1282 = vmatmul.mubr.bf16.gmra.mrb[0].mxu0 %v335
  %v1283 = vpop.f32.mrb[0].mxu0
  %v1284 = vadd.f32 %v1036, %v1283
  %v1285 = vpop.f32.mrb[0].mxu0
  %v1286 = vpop.f32.mrb[0].mxu0
  %v1287 = vadd.f32 %v1036, %v1286
  %v1288 = vpop.f32.mrb[0].mxu0
  %1289 = vmatprep.mubr.bf16.mxu0 0
  %1290 = vmatmul.mubr.bf16.gmra.mrb[0].mxu0 %v338
  %v1291 = vpop.f32.mrb[0].mxu0
  %v1292 = vadd.f32 %v1036, %v1291
  %v1293 = vpop.f32.mrb[0].mxu0
  %v1294 = vpop.f32.mrb[0].mxu0
  %v1295 = vadd.f32 %v1036, %v1294
  %v1296 = vpop.f32.mrb[0].mxu0
  %1297 = vmatprep.mubr.bf16.mxu0 0
  %1298 = vmatmul.mubr.bf16.gmra.mrb[0].mxu0 %v341
  %v1299 = vpop.f32.mrb[0].mxu0
  %v1300 = vadd.f32 %v1036, %v1299
  %v1301 = vpop.f32.mrb[0].mxu0
  %v1302 = vpop.f32.mrb[0].mxu0
  %v1303 = vadd.f32 %v1036, %v1302
  %v1304 = vpop.f32.mrb[0].mxu0
  %1305 = vmatprep.mubr.bf16.mxu0 0
  %1306 = vmatmul.mubr.bf16.gmra.mrb[0].mxu0 %v344
  %v1307 = vpop.f32.mrb[0].mxu0
  %v1308 = vadd.f32 %v1036, %v1307
  %v1309 = vpop.f32.mrb[0].mxu0
  %v1310 = vpop.f32.mrb[0].mxu0
  %v1311 = vadd.f32 %v1036, %v1310
  %v1312 = vpop.f32.mrb[0].mxu0
  %1313 = vmatprep.mubr.bf16.mxu0 0
  %1314 = vmatmul.mubr.bf16.gmra.mrb[0].mxu0 %v347
  %v1315 = vpop.f32.mrb[0].mxu0
  %v1316 = vadd.f32 %v1036, %v1315
  %v1317 = vpop.f32.mrb[0].mxu0
  %v1318 = vpop.f32.mrb[0].mxu0
  %v1319 = vadd.f32 %v1036, %v1318
  %v1320 = vpop.f32.mrb[0].mxu0
  %1321 = vmatprep.mubr.bf16.mxu0 0
  %1322 = vmatmul.mubr.bf16.gmra.mrb[0].mxu0 %v350
  %v1323 = vpop.f32.mrb[0].mxu0
  %v1324 = vadd.f32 %v1036, %v1323
  %v1325 = vpop.f32.mrb[0].mxu0
  %v1326 = vpop.f32.mrb[0].mxu0
  %v1327 = vadd.f32 %v1036, %v1326
  %v1328 = vpop.f32.mrb[0].mxu0
  %1329 = vdwg.mxu0
  %v1330 = vpack.c.bf16 %v1079, %v1076
  %v1331 = vpack.c.bf16 %v1087, %v1084
  %v1332 = vpack.c.bf16 %v1095, %v1092
  %v1333 = vpack.c.bf16 %v1103, %v1100
  %v1334 = vpack.c.bf16 %v1111, %v1108
  %v1335 = vpack.c.bf16 %v1119, %v1116
  %v1336 = vpack.c.bf16 %v1127, %v1124
  %v1337 = vpack.c.bf16 %v1135, %v1132
  %v1338 = vpack.c.bf16 %v1143, %v1140
  %v1339 = vpack.c.bf16 %v1151, %v1148
  %v1340 = vpack.c.bf16 %v1159, %v1156
  %v1341 = vpack.c.bf16 %v1167, %v1164
  %v1342 = vpack.c.bf16 %v1175, %v1172
  %v1343 = vpack.c.bf16 %v1183, %v1180
  %v1344 = vpack.c.bf16 %v1191, %v1188
  %v1345 = vpack.c.bf16 %v1199, %v1196
  %v1346 = vpack.c.bf16 %v1207, %v1204
  %v1347 = vpack.c.bf16 %v1215, %v1212
  %v1348 = vpack.c.bf16 %v1223, %v1220
  %v1349 = vpack.c.bf16 %v1231, %v1228
  %v1350 = vpack.c.bf16 %v1239, %v1236
  %v1351 = vpack.c.bf16 %v1247, %v1244
  %v1352 = vpack.c.bf16 %v1255, %v1252
  %v1353 = vpack.c.bf16 %v1263, %v1260
  %v1354 = vpack.c.bf16 %v1271, %v1268
  %v1355 = vpack.c.bf16 %v1279, %v1276
  %v1356 = vpack.c.bf16 %v1287, %v1284
  %v1357 = vpack.c.bf16 %v1295, %v1292
  %v1358 = vpack.c.bf16 %v1303, %v1300
  %v1359 = vpack.c.bf16 %v1311, %v1308
  %v1360 = vpack.c.bf16 %v1319, %v1316
  %v1361 = vpack.c.bf16 %v1327, %v1324
  %v1394 = vunpack.c.l.b16 %v1330
  %v1395 = vunpack.c.h.b16 %v1330
  %v1396 = vunpack.c.l.b16 %v1331
  %v1397 = vunpack.c.h.b16 %v1331
  %v1398 = vunpack.c.l.b16 %v1332
  %v1399 = vunpack.c.h.b16 %v1332
  %v1400 = vunpack.c.l.b16 %v1333
  %v1401 = vunpack.c.h.b16 %v1333
  %v1402 = vunpack.c.l.b16 %v1334
  %v1403 = vunpack.c.h.b16 %v1334
  %v1404 = vunpack.c.l.b16 %v1335
  %v1405 = vunpack.c.h.b16 %v1335
  %v1406 = vunpack.c.l.b16 %v1336
  %v1407 = vunpack.c.h.b16 %v1336
  %v1408 = vunpack.c.l.b16 %v1337
  %v1409 = vunpack.c.h.b16 %v1337
  %v1410 = vunpack.c.l.b16 %v1338
  %v1411 = vunpack.c.h.b16 %v1338
  %v1412 = vunpack.c.l.b16 %v1339
  %v1413 = vunpack.c.h.b16 %v1339
  %v1414 = vunpack.c.l.b16 %v1340
  %v1415 = vunpack.c.h.b16 %v1340
  %v1416 = vunpack.c.l.b16 %v1341
  %v1417 = vunpack.c.h.b16 %v1341
  %v1418 = vunpack.c.l.b16 %v1342
  %v1419 = vunpack.c.h.b16 %v1342
  %v1420 = vunpack.c.l.b16 %v1343
  %v1421 = vunpack.c.h.b16 %v1343
  %v1422 = vunpack.c.l.b16 %v1344
  %v1423 = vunpack.c.h.b16 %v1344
  %v1424 = vunpack.c.l.b16 %v1345
  %v1425 = vunpack.c.h.b16 %v1345
  %v1426 = vunpack.c.l.b16 %v1346
  %v1427 = vunpack.c.h.b16 %v1346
  %v1428 = vunpack.c.l.b16 %v1347
  %v1429 = vunpack.c.h.b16 %v1347
  %v1430 = vunpack.c.l.b16 %v1348
  %v1431 = vunpack.c.h.b16 %v1348
  %v1432 = vunpack.c.l.b16 %v1349
  %v1433 = vunpack.c.h.b16 %v1349
  %v1434 = vunpack.c.l.b16 %v1350
  %v1435 = vunpack.c.h.b16 %v1350
  %v1436 = vunpack.c.l.b16 %v1351
  %v1437 = vunpack.c.h.b16 %v1351
  %v1438 = vunpack.c.l.b16 %v1352
  %v1439 = vunpack.c.h.b16 %v1352
  %v1440 = vunpack.c.l.b16 %v1353
  %v1441 = vunpack.c.h.b16 %v1353
  %v1442 = vunpack.c.l.b16 %v1354
  %v1443 = vunpack.c.h.b16 %v1354
  %v1444 = vunpack.c.l.b16 %v1355
  %v1445 = vunpack.c.h.b16 %v1355
  %v1446 = vunpack.c.l.b16 %v1356
  %v1447 = vunpack.c.h.b16 %v1356
  %v1448 = vunpack.c.l.b16 %v1357
  %v1449 = vunpack.c.h.b16 %v1357
  %v1450 = vunpack.c.l.b16 %v1358
  %v1451 = vunpack.c.h.b16 %v1358
  %v1452 = vunpack.c.l.b16 %v1359
  %v1453 = vunpack.c.h.b16 %v1359
  %v1454 = vunpack.c.l.b16 %v1360
  %v1455 = vunpack.c.h.b16 %v1360
  %v1456 = vunpack.c.l.b16 %v1361
  %v1457 = vunpack.c.h.b16 %v1361
  %v1458 = vpack.c.b16 %v1394, %v1394
  %v1459 = vpack.c.b16 %v1395, %v1395
  %v1460 = vpack.c.b16 %v1396, %v1396
  %v1461 = vpack.c.b16 %v1397, %v1397
  %v1462 = vpack.c.b16 %v1398, %v1398
  %v1463 = vpack.c.b16 %v1399, %v1399
  %v1464 = vpack.c.b16 %v1400, %v1400
  %v1465 = vpack.c.b16 %v1401, %v1401
  %v1466 = vpack.c.b16 %v1402, %v1402
  %v1467 = vpack.c.b16 %v1403, %v1403
  %v1468 = vpack.c.b16 %v1404, %v1404
  %v1469 = vpack.c.b16 %v1405, %v1405
  %v1470 = vpack.c.b16 %v1406, %v1406
  %v1471 = vpack.c.b16 %v1407, %v1407
  %v1472 = vpack.c.b16 %v1408, %v1408
  %v1473 = vpack.c.b16 %v1409, %v1409
  %v1474 = vpack.c.b16 %v1410, %v1410
  %v1475 = vpack.c.b16 %v1411, %v1411
  %v1476 = vpack.c.b16 %v1412, %v1412
  %v1477 = vpack.c.b16 %v1413, %v1413
  %v1478 = vpack.c.b16 %v1414, %v1414
  %v1479 = vpack.c.b16 %v1415, %v1415
  %v1480 = vpack.c.b16 %v1416, %v1416
  %v1481 = vpack.c.b16 %v1417, %v1417
  %v1482 = vpack.c.b16 %v1418, %v1418
  %v1483 = vpack.c.b16 %v1419, %v1419
  %v1484 = vpack.c.b16 %v1420, %v1420
  %v1485 = vpack.c.b16 %v1421, %v1421
  %v1486 = vpack.c.b16 %v1422, %v1422
  %v1487 = vpack.c.b16 %v1423, %v1423
  %v1488 = vpack.c.b16 %v1424, %v1424
  %v1489 = vpack.c.b16 %v1425, %v1425
  %v1490 = vpack.c.b16 %v1426, %v1426
  %v1491 = vpack.c.b16 %v1427, %v1427
  %v1492 = vpack.c.b16 %v1428, %v1428
  %v1493 = vpack.c.b16 %v1429, %v1429
  %v1494 = vpack.c.b16 %v1430, %v1430
  %v1495 = vpack.c.b16 %v1431, %v1431
  %v1496 = vpack.c.b16 %v1432, %v1432
  %v1497 = vpack.c.b16 %v1433, %v1433
  %v1498 = vpack.c.b16 %v1434, %v1434
  %v1499 = vpack.c.b16 %v1435, %v1435
  %v1500 = vpack.c.b16 %v1436, %v1436
  %v1501 = vpack.c.b16 %v1437, %v1437
  %v1502 = vpack.c.b16 %v1438, %v1438
  %v1503 = vpack.c.b16 %v1439, %v1439
  %v1504 = vpack.c.b16 %v1440, %v1440
  %v1505 = vpack.c.b16 %v1441, %v1441
  %v1506 = vpack.c.b16 %v1442, %v1442
  %v1507 = vpack.c.b16 %v1443, %v1443
  %v1508 = vpack.c.b16 %v1444, %v1444
  %v1509 = vpack.c.b16 %v1445, %v1445
  %v1510 = vpack.c.b16 %v1446, %v1446
  %v1511 = vpack.c.b16 %v1447, %v1447
  %v1512 = vpack.c.b16 %v1448, %v1448
  %v1513 = vpack.c.b16 %v1449, %v1449
  %v1514 = vpack.c.b16 %v1450, %v1450
  %v1515 = vpack.c.b16 %v1451, %v1451
  %v1516 = vpack.c.b16 %v1452, %v1452
  %v1517 = vpack.c.b16 %v1453, %v1453
  %v1518 = vpack.c.b16 %v1454, %v1454
  %v1519 = vpack.c.b16 %v1455, %v1455
  %v1520 = vpack.c.b16 %v1456, %v1456
  %v1521 = vpack.c.b16 %v1457, %v1457
  %1586 = vst.msk [vmem:[%s6] sm:$0xf] %vm965, %v1458
  %1587 = vst.msk [vmem:[%s6 + $0x4] sm:$0xf] %vm965, %v1459
  %1588 = vst.msk [vmem:[%s6 + $0x8] sm:$0xf] %vm965, %v1460
  %1589 = vst.msk [vmem:[%s6 + $0xc] sm:$0xf] %vm965, %v1461
  %1590 = vst.msk [vmem:[%s6 + $0x10] sm:$0xf] %vm965, %v1462
  %1591 = vst.msk [vmem:[%s6 + $0x14] sm:$0xf] %vm965, %v1463
  %1592 = vst.msk [vmem:[%s6 + $0x18] sm:$0xf] %vm965, %v1464
  %1593 = vst.msk [vmem:[%s6 + $0x1c] sm:$0xf] %vm965, %v1465
  %1594 = vst.msk [vmem:[%s6 + $0x20] sm:$0xf] %vm965, %v1466
  %1595 = vst.msk [vmem:[%s6 + $0x24] sm:$0xf] %vm965, %v1467
  %1596 = vst.msk [vmem:[%s6 + $0x28] sm:$0xf] %vm965, %v1468
  %1597 = vst.msk [vmem:[%s6 + $0x2c] sm:$0xf] %vm965, %v1469
  %1598 = vst.msk [vmem:[%s6 + $0x30] sm:$0xf] %vm965, %v1470
  %1599 = vst.msk [vmem:[%s6 + $0x34] sm:$0xf] %vm965, %v1471
  %1600 = vst.msk [vmem:[%s6 + $0x38] sm:$0xf] %vm965, %v1472
  %1601 = vst.msk [vmem:[%s6 + $0x3c] sm:$0xf] %vm965, %v1473
  %1602 = vst.msk [vmem:[%s6 + $0x40] sm:$0xf] %vm965, %v1474
  %1603 = vst.msk [vmem:[%s6 + $0x44] sm:$0xf] %vm965, %v1475
  %1604 = vst.msk [vmem:[%s6 + $0x48] sm:$0xf] %vm965, %v1476
  %1605 = vst.msk [vmem:[%s6 + $0x4c] sm:$0xf] %vm965, %v1477
  %1606 = vst.msk [vmem:[%s6 + $0x50] sm:$0xf] %vm965, %v1478
  %1607 = vst.msk [vmem:[%s6 + $0x54] sm:$0xf] %vm965, %v1479
  %1608 = vst.msk [vmem:[%s6 + $0x58] sm:$0xf] %vm965, %v1480
  %1609 = vst.msk [vmem:[%s6 + $0x5c] sm:$0xf] %vm965, %v1481
  %1610 = vst.msk [vmem:[%s6 + $0x60] sm:$0xf] %vm965, %v1482
  %1611 = vst.msk [vmem:[%s6 + $0x64] sm:$0xf] %vm965, %v1483
  %1612 = vst.msk [vmem:[%s6 + $0x68] sm:$0xf] %vm965, %v1484
  %1613 = vst.msk [vmem:[%s6 + $0x6c] sm:$0xf] %vm965, %v1485
  %1614 = vst.msk [vmem:[%s6 + $0x70] sm:$0xf] %vm965, %v1486
  %1615 = vst.msk [vmem:[%s6 + $0x74] sm:$0xf] %vm965, %v1487
  %1616 = vst.msk [vmem:[%s6 + $0x78] sm:$0xf] %vm965, %v1488
  %1617 = vst.msk [vmem:[%s6 + $0x7c] sm:$0xf] %vm965, %v1489
  %1618 = vst.msk [vmem:[%s6 + $0x80] sm:$0xf] %vm965, %v1490
  %1619 = vst.msk [vmem:[%s6 + $0x84] sm:$0xf] %vm965, %v1491
  %1620 = vst.msk [vmem:[%s6 + $0x88] sm:$0xf] %vm965, %v1492
  %1621 = vst.msk [vmem:[%s6 + $0x8c] sm:$0xf] %vm965, %v1493
  %1622 = vst.msk [vmem:[%s6 + $0x90] sm:$0xf] %vm965, %v1494
  %1623 = vst.msk [vmem:[%s6 + $0x94] sm:$0xf] %vm965, %v1495
  %1624 = vst.msk [vmem:[%s6 + $0x98] sm:$0xf] %vm965, %v1496
  %1625 = vst.msk [vmem:[%s6 + $0x9c] sm:$0xf] %vm965, %v1497
  %1626 = vst.msk [vmem:[%s6 + $0xa0] sm:$0xf] %vm965, %v1498
  %1627 = vst.msk [vmem:[%s6 + $0xa4] sm:$0xf] %vm965, %v1499
  %1628 = vst.msk [vmem:[%s6 + $0xa8] sm:$0xf] %vm965, %v1500
  %1629 = vst.msk [vmem:[%s6 + $0xac] sm:$0xf] %vm965, %v1501
  %1630 = vst.msk [vmem:[%s6 + $0xb0] sm:$0xf] %vm965, %v1502
  %1631 = vst.msk [vmem:[%s6 + $0xb4] sm:$0xf] %vm965, %v1503
  %1632 = vst.msk [vmem:[%s6 + $0xb8] sm:$0xf] %vm965, %v1504
  %1633 = vst.msk [vmem:[%s6 + $0xbc] sm:$0xf] %vm965, %v1505
  %1634 = vst.msk [vmem:[%s6 + $0xc0] sm:$0xf] %vm965, %v1506
  %1635 = vst.msk [vmem:[%s6 + $0xc4] sm:$0xf] %vm965, %v1507
  %1636 = vst.msk [vmem:[%s6 + $0xc8] sm:$0xf] %vm965, %v1508
  %1637 = vst.msk [vmem:[%s6 + $0xcc] sm:$0xf] %vm965, %v1509
  %1638 = vst.msk [vmem:[%s6 + $0xd0] sm:$0xf] %vm965, %v1510
  %1639 = vst.msk [vmem:[%s6 + $0xd4] sm:$0xf] %vm965, %v1511
  %1640 = vst.msk [vmem:[%s6 + $0xd8] sm:$0xf] %vm965, %v1512
  %1641 = vst.msk [vmem:[%s6 + $0xdc] sm:$0xf] %vm965, %v1513
  %1642 = vst.msk [vmem:[%s6 + $0xe0] sm:$0xf] %vm965, %v1514
  %1643 = vst.msk [vmem:[%s6 + $0xe4] sm:$0xf] %vm965, %v1515
  %1644 = vst.msk [vmem:[%s6 + $0xe8] sm:$0xf] %vm965, %v1516
  %1645 = vst.msk [vmem:[%s6 + $0xec] sm:$0xf] %vm965, %v1517
  %1646 = vst.msk [vmem:[%s6 + $0xf0] sm:$0xf] %vm965, %v1518
  %1647 = vst.msk [vmem:[%s6 + $0xf4] sm:$0xf] %vm965, %v1519
  %1648 = vst.msk [vmem:[%s6 + $0xf8] sm:$0xf] %vm965, %v1520
  %1649 = vst.msk [vmem:[%s6 + $0xfc] sm:$0xf] %vm965, %v1521
  // Predicated region
  $region22: #{tpu_custom_call.1} parent=0 // pred_check
    _
  $region23: #{tpu_custom_call.1} parent=0 // pred_check_branch
    %1651 = sbr.rel (0) target = $region25
  $region24: #{tpu_custom_call.1} parent=0 // pred_region
    _
  $region25: #{tpu_custom_call.1} parent=0 // pred_fallthru
    _
  // Predicated region
  $region26: #{tpu_custom_call.1} parent=0 // pred_check
    _
  $region27: #{tpu_custom_call.1} parent=0 // pred_check_branch
    %1653 = sbr.rel (0) target = $region29
  $region28: #{tpu_custom_call.1} parent=0 // pred_region
    _
  $region29: #{tpu_custom_call.1} parent=0 // pred_fallthru
    _
  // Predicated region
  $region30: #{tpu_custom_call.1} parent=0 // pred_check
    _
  $region31: #{tpu_custom_call.1} parent=0 // pred_check_branch
    %1655 = sbr.rel (0) target = $region33
  $region32: #{tpu_custom_call.1} parent=0 // pred_region
    _
  $region33: #{tpu_custom_call.1} parent=0 // pred_fallthru
    _
  // Predicated region
  $region34: #{tpu_custom_call.1} parent=0 // pred_check
    _
  $region35: #{tpu_custom_call.1} parent=0 // pred_check_branch
    %1657 = sbr.rel (0) target = $region37
  $region36: #{tpu_custom_call.1} parent=0 // pred_region
    _
  $region37: #{tpu_custom_call.1} parent=0 // pred_fallthru
    _

</llo_original>
